<compile_context>
chip_gen: v7x
topology: tpu7x:2x2x1
jax: 0.10.0
libtpu: 0.0.40
codegen_flags: <defaults>
</compile_context>

<pallas_src>
import jax
import jax.numpy as jnp
from jax.experimental import pallas as pl
from jax.experimental.pallas import tpu as pltpu


def deconv_relu_kernel(x_ref, w_ref, b_ref, o_ref):
    # x_ref: (1, Cin, T)   w_ref: (CK, Cin)   b_ref: (CK, 1)   o_ref: (1, CK, T)
    x = x_ref[0]                                                        # (Cin, T)
    acc = jnp.dot(w_ref[...], x, preferred_element_type=jnp.float32)   # (CK, T) on MXU
    acc = acc + b_ref[...]                                              # bias bcast over lanes
    o_ref[0] = jnp.maximum(acc, 0.0).astype(o_ref.dtype)                # ReLU (normalization='none')


def upsampling_function_forward(x, weight, bias, *, stride=2, spatial_tile=2048):
    """ConvTranspose3d(Cin, Cout, kernel=stride, stride=stride, padding=0) + ReLU.

    x:      (N, Cin, D, H, W)    float32  (NCDHW, PyTorch convention)
    weight: (Cin, Cout, s, s, s) float32  (PyTorch ConvTranspose3d weight layout)
    bias:   (Cout,)              float32
    returns (N, Cout, s*D, s*H, s*W) float32

    spatial_tile: lanes per grid step (sweep 512-4096; larger on v7x). Bigger tiles
    amortize the ~0.35us/step overhead; VMEM use is tiny (~CK*tile*4B double-buffered).
    """
    N, Cin, D, H, W = x.shape
    Cout = weight.shape[1]
    s = stride
    K = s * s * s
    CK = Cout * K
    DHW = D * H * W

    # ---- free views / tiny one-time prep (no big HBM passes) ----
    x3 = x.reshape(N, Cin, DHW)                        # native layout, free reshape
    w2 = jnp.transpose(weight.reshape(Cin, CK))        # (CK, Cin), tiny
    b2 = jnp.repeat(bias, K).reshape(CK, 1)            # (CK, 1), bias[co] per (co, k)

    # ---- lane-dense spatial tile; no divisibility assert (cdiv + masked tail) ----
    if DHW <= spatial_tile:
        tile = DHW                                     # full extent is always legal
    else:
        tile = max(128, (spatial_tile // 128) * 128)   # keep stores lane-dense
    n_sp = pl.cdiv(DHW, tile)                          # partial last block is masked on write

    # NOTE: Cin is tiny here so the full-Cin contraction is done in one dot.
    # For large Cin add a reduction grid axis ('arbitrary') with an f32 accumulator.
    out3 = pl.pallas_call(
        deconv_relu_kernel,
        out_shape=jax.ShapeDtypeStruct((N, CK, DHW), x.dtype),
        grid_spec=pltpu.PrefetchScalarGridSpec(
            num_scalar_prefetch=0,
            grid=(N, n_sp),
            in_specs=[
                pl.BlockSpec((1, Cin, tile), lambda n, j: (n, 0, j)),
                pl.BlockSpec((CK, Cin), lambda n, j: (0, 0)),   # resident (constant index)
                pl.BlockSpec((CK, 1), lambda n, j: (0, 0)),     # resident
            ],
            out_specs=pl.BlockSpec((1, CK, tile), lambda n, j: (n, 0, j)),
        ),
        compiler_params=pltpu.CompilerParams(
            dimension_semantics=("parallel", "parallel")),
    )(x3, w2, b2)

    # ---- glue: scatter each voxel's (Cout, s, s, s) block into the upsampled grid ----
    # TODO(synk): the sub-pixel (W,s)->sW element interleave cannot be expressed by a
    # BlockSpec and an in-kernel minor-dim 7-D transpose is brittle in Mosaic, so this
    # final permute stays in XLA.
    out = out3.reshape(N, Cout, s, s, s, D, H, W)            # (n, co, kd, kh, kw, d, h, w)
    out = jnp.transpose(out, (0, 1, 5, 2, 6, 3, 7, 4))       # (n, co, d, kd, h, kh, w, kw)
    return out.reshape(N, Cout, D * s, H * s, W * s)


if __name__ == "__main__":
    key = jax.random.PRNGKey(0)
    N, Cin, Cout = 2, 4, 8
    D = H = W = 16
    stride = 2

    kx, kw, kb = jax.random.split(key, 3)
    x = jax.random.normal(kx, (N, Cin, D, H, W), dtype=jnp.float32)
    # PyTorch ConvTranspose3d weight shape: (in_channels, out_channels, kD, kH, kW)
    weight = 0.1 * jax.random.normal(kw, (Cin, Cout, stride, stride, stride), dtype=jnp.float32)
    bias = 0.1 * jax.random.normal(kb, (Cout,), dtype=jnp.float32)

    out = upsampling_function_forward(x, weight, bias, stride=stride, spatial_tile=2048)
    jax.block_until_ready(out)

    # reference: ConvTranspose3d(kernel=stride, stride=stride, padding=0) + bias + ReLU
    ref = jnp.einsum("nidhw,iopqr->nodphqwr", x, weight,
                     precision=jax.lax.Precision.HIGHEST)
    ref = ref + bias[None, :, None, None, None, None, None, None]
    ref = ref.reshape(N, Cout, D * stride, H * stride, W * stride)
    ref = jnp.maximum(ref, 0.0)

    assert out.shape == (N, Cout, D * stride, H * stride, W * stride)
    assert bool(jnp.all(out >= 0.0))                       # ReLU applied
    assert bool(jnp.allclose(out, ref, atol=1e-3, rtol=1e-3))

    print("KERNEL_OK")
</pallas_src>

<mosaic_0001>
module attributes {stable_mosaic.version = 11 : i64} {
  func.func @deconv_relu_kernel(%arg0: i32, %arg1: i32, %arg2: memref<1x4x2048xf32, #tpu.memory_space<vmem>>, %arg3: memref<64x4xf32, #tpu.memory_space<vmem>>, %arg4: memref<64x1xf32, #tpu.memory_space<vmem>>, %arg5: memref<1x64x2048xf32, #tpu.memory_space<vmem>>) attributes {dimension_semantics = [#tpu.dimension_semantics<parallel>, #tpu.dimension_semantics<parallel>], iteration_bounds = array<i64: 2, 2>, scalar_prefetch = 0 : i64, scratch_operands = 0 : i64, tpu.core_type = #tpu.core_type<tc>, window_params = [{transform_indices = @transform_0, window_bounds = array<i64: 1, 4, 2048>}, {pipeline_mode = #tpu.pipeline_mode<synchronous>, transform_indices = @transform_1, window_bounds = array<i64: 64, 4>}, {pipeline_mode = #tpu.pipeline_mode<synchronous>, transform_indices = @transform_2, window_bounds = array<i64: 64, 1>}, {transform_indices = @transform_3, window_bounds = array<i64: 1, 64, 2048>}]} {
    %c0 = arith.constant 0 : index
    %c0_0 = arith.constant 0 : index
    %c0_1 = arith.constant 0 : index
    %0 = vector.load %arg2[%c0, %c0_0, %c0_1] : memref<1x4x2048xf32, #tpu.memory_space<vmem>>, vector<1x4x2048xf32>
    %1 = vector.shape_cast %0 : vector<1x4x2048xf32> to vector<4x2048xf32>
    %c0_2 = arith.constant 0 : index
    %c0_3 = arith.constant 0 : index
    %2 = vector.load %arg3[%c0_2, %c0_3] : memref<64x4xf32, #tpu.memory_space<vmem>>, vector<64x4xf32>
    %cst = arith.constant dense<0.000000e+00> : vector<64x2048xf32>
    %3 = tpu.matmul %2, %1, %cst {dimension_numbers = #tpu.dot_dimension_numbers<[1], [0], [0], [1], [0, 0, 1, 1], [], []>} : vector<64x4xf32>, vector<4x2048xf32>, vector<64x2048xf32> -> vector<64x2048xf32>
    %c0_4 = arith.constant 0 : index
    %c0_5 = arith.constant 0 : index
    %4 = vector.load %arg4[%c0_4, %c0_5] : memref<64x1xf32, #tpu.memory_space<vmem>>, vector<64x1xf32>
    %5 = vector.broadcast %4 : vector<64x1xf32> to vector<64x2048xf32>
    %6 = arith.addf %3, %5 : vector<64x2048xf32>
    %cst_6 = arith.constant 0.000000e+00 : f32
    %7 = vector.broadcast %cst_6 : f32 to vector<64x2048xf32>
    %8 = arith.maximumf %6, %7 : vector<64x2048xf32>
    %c0_7 = arith.constant 0 : index
    %c0_8 = arith.constant 0 : index
    %c0_9 = arith.constant 0 : index
    %9 = vector.load %arg5[%c0_7, %c0_8, %c0_9] : memref<1x64x2048xf32, #tpu.memory_space<vmem>>, vector<1x64x2048xf32>
    %10 = vector.shape_cast %9 : vector<1x64x2048xf32> to vector<64x2048xf32>
    %11 = vector.shape_cast %8 : vector<64x2048xf32> to vector<1x64x2048xf32>
    tpu.vector_store %arg5[%c0_7, %c0_8, %c0_9], %11 {strides = array<i32>} : memref<1x64x2048xf32, #tpu.memory_space<vmem>>, vector<1x64x2048xf32>,
    return
  }
  func.func @transform_0(%arg0: i32, %arg1: i32) -> (i32, i32, i32) {
    %c0_i32 = arith.constant 0 : i32
    %c0_i32_0 = arith.constant 0 : i32
    return %arg0, %c0_i32, %arg1 : i32, i32, i32
  }
  func.func @transform_1(%arg0: i32, %arg1: i32) -> (i32, i32) {
    %c0_i32 = arith.constant 0 : i32
    %c0_i32_0 = arith.constant 0 : i32
    %c0_i32_1 = arith.constant 0 : i32
    return %c0_i32, %c0_i32_0 : i32, i32
  }
  func.func @transform_2(%arg0: i32, %arg1: i32) -> (i32, i32) {
    %c0_i32 = arith.constant 0 : i32
    %c0_i32_0 = arith.constant 0 : i32
    %c0_i32_1 = arith.constant 0 : i32
    return %c0_i32, %c0_i32_0 : i32, i32
  }
  func.func @transform_3(%arg0: i32, %arg1: i32) -> (i32, i32, i32) {
    %c0_i32 = arith.constant 0 : i32
    %c0_i32_0 = arith.constant 0 : i32
    return %arg0, %c0_i32, %arg1 : i32, i32, i32
  }
}

</mosaic_0001>

<llo_original>
// kernel: tpu_custom_call.1
$region0: #{tpu_custom_call.1}
  #allocation0 [shape = 'u32[]', space=smem, size = 0x4, offset = 0x4, fixed_abs, tag = 'smem constant byte address 0x4 - core index']
  #allocation1 [shape = 'u32[144,128]{1,0:T(1,128)}', space=vmem, size = 0x12000, scoped, tag = 'internal scratch']
  %s0 = inlined_call_operand.hbm [shape: f32[2,4,4096], index: 0, kind: input, shape index: {}]
  %s1 = inlined_call_operand.vmem [shape: f32[64,4], index: 1, kind: input, shape index: {}]
  %s2 = inlined_call_operand.vmem [shape: f32[64,1], index: 2, kind: input, shape index: {}]
  %s3 = inlined_call_operand.hbm [shape: f32[2,64,4096], index: 3, kind: output, shape index: {}]
  %s4 = sld [smem:[#allocation0]]
  $region49: #{tpu_custom_call.1} parent=0
    _
  %s6 = ssub.s32 1, %s4
  %s7 = scalar_select 0, %s6, %s4
  $region1: #{tpu_custom_call.1} parent=0
    #allocation2 [shape = 'u8[65536]{0}', space=vmem, size = 0x10000, scoped, tag = 'input window, operand 0']
    #allocation3 [shape = 's32[2]{0}', space=sflag, size = 0x8, scoped, tag = 'scoped memory for tpu_custom_call.1']
    #allocation4 [shape = 's32[2]{0}', space=sflag, size = 0x8, scoped, tag = 'scoped memory for tpu_custom_call.1']
    #allocation5 [shape = 'u8[1048576]{0}', space=vmem, size = 0x100000, scoped, tag = 'output window, operand 0']
    %8 = vsyncpa [#allocation3], 0
    %s9 = scalar_lea.sflag [#allocation3], 1
    %10 = vsyncpa %s9, 0
    %11 = vsyncpa [#allocation4], 0
    %s12 = scalar_lea.sflag [#allocation4], 1
    %13 = vsyncpa %s12, 0
    loop: start=0, step=1, limit=6
    $region2: #{tpu_custom_call.1} parent=1 // loop_pre_header
      _
    $region3: #{tpu_custom_call.1} parent=1 // loop_header
      %s15 = sphi 0, %s19
      %p16 = scmp.ge.s32.totalorder %s15, 6
      %s22 = sphi 0, %s34
      %s23 = sphi 0, %s30
      %s24 = sphi 0, %s22
      %s25 = sphi 0, %s23
      %s26 = sphi 0, %s24
      %s27 = sphi 0, %s25
      %s39 = sphi 0, %s41
      %s42 = sphi 0, %s39
      %s43 = sphi 0, %s42
      %s59 = sphi 0, %s43
      %s63 = sphi 0, %s63
      %s65 = sphi 0, %s63
      %s66 = sphi 0, %s65
      %s80 = sphi 0, %s66
      %s84 = sphi 0, %s84
      %s86 = sphi 0, %s84
      %s87 = sphi 0, %s86
      %s101 = sphi 0, %s87
      %s109 = sphi 0, %s111
      %s112 = sphi 0, %s109
      %s113 = sphi 0, %s112
      %s129 = sphi 0, %s113
    $region4: #{tpu_custom_call.1} parent=1 // loop_header_branch
      %18 = sbr.rel (%p16) target = $region8
    $region5: #{tpu_custom_call.1} parent=1 // loop_body
      %s20 = ssub.s32 %s15, 1
      %s21 = ssub.s32 %s15, 2
      %s28 = sadd.s32 1, %s23
      %p29 = scmp.ge.s32.totalorder %s28, 2
      %s30 = scalar_select %p29, 0, %s28
      %s31 = sadd.s32 1, %s22
      %s32 = scalar_select %p29, %s31, %s22
      %p33 = scmp.ge.s32.totalorder %s32, 2
      %s34 = scalar_select %p33, 0, %s32
      %s35 = ssub.s32 %s22, %s34
      %s36 = ssub.s32 %s23, %s30
      %s37 = sor.u32 %s35, %s36
      %p38 = scmp.eq.s32.totalorder %s37, 0
      %s40 = sadd.s32 %s39, 1
      %s41 = scalar_select %p38, %s39, %s40
      %p44 = pneg %p38
      %p45 = scmp.eq.s32.totalorder %s15, 3
      %p46 = por %p44, %p45
      %p47 = scmp.ne.s32.totalorder %s39, %s42
      %p48 = scmp.eq.s32.totalorder %s15, 0
      %p49 = por %p47, %p48
      %p50 = scmp.ne.s32.totalorder %s39, %s42
      %p51 = scmp.eq.s32.totalorder %s20, 3
      %p52 = por %p50, %p51
      %p53 = scmp.ne.s32.totalorder %s42, %s43
      %p54 = scmp.eq.s32.totalorder %s20, 0
      %p55 = por %p53, %p54
      %p56 = scmp.ne.s32.totalorder %s42, %s43
      %p57 = scmp.eq.s32.totalorder %s21, 3
      %p58 = por %p56, %p57
      %p60 = scmp.ne.s32.totalorder %s43, %s59
      %p61 = scmp.eq.s32.totalorder %s21, 0
      %p62 = por %p60, %p61
      %s64 = sadd.s32 %s63, 1
      %p67 = scmp.eq.s32.totalorder %s15, 3
      %p68 = scmp.ne.s32.totalorder %s63, %s65
      %p69 = scmp.eq.s32.totalorder %s15, 0
      %p70 = por %p68, %p69
      %p71 = scmp.ne.s32.totalorder %s63, %s65
      %p72 = scmp.eq.s32.totalorder %s20, 3
      %p73 = por %p71, %p72
      %p74 = scmp.ne.s32.totalorder %s65, %s66
      %p75 = scmp.eq.s32.totalorder %s20, 0
      %p76 = por %p74, %p75
      %p77 = scmp.ne.s32.totalorder %s65, %s66
      %p78 = scmp.eq.s32.totalorder %s21, 3
      %p79 = por %p77, %p78
      %p81 = scmp.ne.s32.totalorder %s66, %s80
      %p82 = scmp.eq.s32.totalorder %s21, 0
      %p83 = por %p81, %p82
      %s85 = sadd.s32 %s84, 1
      %p88 = scmp.eq.s32.totalorder %s15, 3
      %p89 = scmp.ne.s32.totalorder %s84, %s86
      %p90 = scmp.eq.s32.totalorder %s15, 0
      %p91 = por %p89, %p90
      %p92 = scmp.ne.s32.totalorder %s84, %s86
      %p93 = scmp.eq.s32.totalorder %s20, 3
      %p94 = por %p92, %p93
      %p95 = scmp.ne.s32.totalorder %s86, %s87
      %p96 = scmp.eq.s32.totalorder %s20, 0
      %p97 = por %p95, %p96
      %p98 = scmp.ne.s32.totalorder %s86, %s87
      %p99 = scmp.eq.s32.totalorder %s21, 3
      %p100 = por %p98, %p99
      %p102 = scmp.ne.s32.totalorder %s87, %s101
      %p103 = scmp.eq.s32.totalorder %s21, 0
      %p104 = por %p102, %p103
      %s105 = ssub.s32 %s22, %s34
      %s106 = ssub.s32 %s23, %s30
      %s107 = sor.u32 %s105, %s106
      %p108 = scmp.eq.s32.totalorder %s107, 0
      %s110 = sadd.s32 %s109, 1
      %s111 = scalar_select %p108, %s109, %s110
      %p114 = pneg %p108
      %p115 = scmp.eq.s32.totalorder %s15, 3
      %p116 = por %p114, %p115
      %p117 = scmp.ne.s32.totalorder %s109, %s112
      %p118 = scmp.eq.s32.totalorder %s15, 0
      %p119 = por %p117, %p118
      %p120 = scmp.ne.s32.totalorder %s109, %s112
      %p121 = scmp.eq.s32.totalorder %s20, 3
      %p122 = por %p120, %p121
      %p123 = scmp.ne.s32.totalorder %s112, %s113
      %p124 = scmp.eq.s32.totalorder %s20, 0
      %p125 = por %p123, %p124
      %p126 = scmp.ne.s32.totalorder %s112, %s113
      %p127 = scmp.eq.s32.totalorder %s21, 3
      %p128 = por %p126, %p127
      %p130 = scmp.ne.s32.totalorder %s113, %s129
      %p131 = scmp.eq.s32.totalorder %s21, 0
      %p132 = por %p130, %p131
      %p133 = scmp.le.s32.totalorder 1, %s15
      %p134 = scmp.lt.s32.totalorder %s15, 5
      %p135 = pnand %p133, %p134
      %p136 = pneg %p135
      // Predicated region
      $region9: #{tpu_custom_call.1} parent=5 // pred_check
        _
      $region10: #{tpu_custom_call.1} parent=5 // pred_check_branch
        %138 = sbr.rel (%p135) target = $region12
      $region11: #{tpu_custom_call.1} parent=5 // pred_region
        %s139 = ssub.s32 %s15, 1
        // Predicated region
        $region13: #{tpu_custom_call.1} parent=11 // pred_check
          %p140 = pneg %p76
        $region14: #{tpu_custom_call.1} parent=11 // pred_check_branch
          %142 = sbr.rel (%p140) target = $region16
        $region15: #{tpu_custom_call.1} parent=11 // pred_region
          _
        $region16: #{tpu_custom_call.1} parent=11 // pred_fallthru
          _
        // Predicated region
        $region17: #{tpu_custom_call.1} parent=11 // pred_check
          %p143 = pneg %p97
        $region18: #{tpu_custom_call.1} parent=11 // pred_check_branch
          %145 = sbr.rel (%p143) target = $region20
        $region19: #{tpu_custom_call.1} parent=11 // pred_region
          _
        $region20: #{tpu_custom_call.1} parent=11 // pred_fallthru
          _
      $region12: #{tpu_custom_call.1} parent=5 // pred_fallthru
        _
      %p146 = scmp.lt.s32.totalorder %s15, 4
      // Predicated region
      $region21: #{tpu_custom_call.1} parent=5 // pred_check
        %p147 = pneg %p146
      $region22: #{tpu_custom_call.1} parent=5 // pred_check_branch
        %149 = sbr.rel (%p147) target = $region24
      $region23: #{tpu_custom_call.1} parent=5 // pred_region
        // Predicated region
        $region25: #{tpu_custom_call.1} parent=23 // pred_check
          %p150 = pneg %p49
        $region26: #{tpu_custom_call.1} parent=23 // pred_check_branch
          %152 = sbr.rel (%p150) target = $region28
        $region27: #{tpu_custom_call.1} parent=23 // pred_region
          %s153 = sand.u32 %s39, 1
          %s154 = scalar_lea.sflag [#allocation3], %s153
          %s155 = sand.u32 %s39, 1
          %s156 = smul.addr %s155, 64
          %s157 = scalar_lea.vmem [#allocation2], %s156
          %s158 = smul.u32 16, %s23
          %s160 = ssub.s32 1024, 1024
          %161 = vsyncadd %s154, %s160
          %s162 = smul.addr %s22, 32
          %s163 = sadd.s32 %s158, %s162
          %s164 = smul.addr %s163, 64
          %s165 = scalar_lea.hbm %s0, %s164
          %s167 = sshll.u32 %s157, 4
          %s168 = int_to_ptr.vmem [resolvable:$true] %s167
          %170 = dma.hbm_to_vmem [thread:$0]  %s165, 1024, %s168, %s154
        $region28: #{tpu_custom_call.1} parent=23 // pred_fallthru
          _
      $region24: #{tpu_custom_call.1} parent=5 // pred_fallthru
        _
      %p171 = scmp.le.s32.totalorder 1, %s15
      %p172 = scmp.lt.s32.totalorder %s15, 5
      %p173 = pnand %p171, %p172
      %p174 = pneg %p173
      // Predicated region
      $region29: #{tpu_custom_call.1} parent=5 // pred_check
        _
      $region30: #{tpu_custom_call.1} parent=5 // pred_check_branch
        %176 = sbr.rel (%p173) target = $region32
      $region31: #{tpu_custom_call.1} parent=5 // pred_region
        %s177 = ssub.s32 %s15, 1
        %s178 = sand.u32 %s42, 1
        %s179 = scalar_lea.sflag [#allocation3], %s178
        %s180 = sand.u32 %s42, 1
        %s181 = smul.addr %s180, 64
        %s182 = scalar_lea.vmem [#allocation2], %s181
        // Predicated region
        $region33: #{tpu_custom_call.1} parent=31 // pred_check
          %p183 = pneg %p55
        $region34: #{tpu_custom_call.1} parent=31 // pred_check_branch
          %185 = sbr.rel (%p183) target = $region36
        $region35: #{tpu_custom_call.1} parent=31 // pred_region
          %186 = dma.done %s179, 1024
        $region36: #{tpu_custom_call.1} parent=31 // pred_fallthru
          _
        %s187 = sand.u32 %s42, 1
        %s188 = scalar_lea.sflag [#allocation3], %s187
        %s189 = sand.u32 %s42, 1
        %s190 = smul.addr %s189, 64
        %s191 = scalar_lea.vmem [#allocation2], %s190
        %p192 = pneg %p55
        %p193 = pneg %p52
        %p194 = pneg %p76
        %p195 = pneg %p73
        %p196 = pneg %p97
        %p197 = pneg %p94
        %p198 = pneg %p125
        %p199 = pneg %p122
        %s200 = sand.u32 %s112, 1
        %s201 = scalar_lea.sflag [#allocation4], %s200
        %s202 = sand.u32 %s112, 1
        %s203 = smul.addr %s202, 1024
        %s204 = scalar_lea.vmem [#allocation5], %s203
        %s205 = smul.u32 16, %s25
        %s206 = smul.u32 16, %s25
        %v207 = vld [vmem:[%s182] sm:$0xff]
        %v208 = vld [vmem:[%s182 + $0x8] sm:$0xff]
        %v209 = vld [vmem:[%s182 + $0x10] sm:$0xff]
        %v210 = vld [vmem:[%s182 + $0x18] sm:$0xff]
        %v211 = vld [vmem:[%s182 + $0x20] sm:$0xff]
        %v212 = vld [vmem:[%s182 + $0x28] sm:$0xff]
        %v213 = vld [vmem:[%s182 + $0x30] sm:$0xff]
        %v214 = vld [vmem:[%s182 + $0x38] sm:$0xff]
        %v215 = vld [vmem:[%s1] sm:$0xff]
        %v216 = vld [vmem:[%s1 + $0x8] sm:$0xff]
        %v217 = vld [vmem:[%s1 + $0x10] sm:$0xff]
        %v218 = vld [vmem:[%s1 + $0x18] sm:$0xff]
        %v219 = vld [vmem:[%s1 + $0x20] sm:$0xff]
        %v220 = vld [vmem:[%s1 + $0x28] sm:$0xff]
        %v221 = vld [vmem:[%s1 + $0x30] sm:$0xff]
        %v222 = vld [vmem:[%s1 + $0x38] sm:$0xff]
        %v223 = vld [vmem:[%s2] sm:$0xff]
        %v224 = vld [vmem:[%s2 + $0x8] sm:$0xff]
        %v225 = vld [vmem:[%s2 + $0x10] sm:$0xff]
        %v226 = vld [vmem:[%s2 + $0x18] sm:$0xff]
        %v227 = vld [vmem:[%s2 + $0x20] sm:$0xff]
        %v228 = vld [vmem:[%s2 + $0x28] sm:$0xff]
        %v229 = vld [vmem:[%s2 + $0x30] sm:$0xff]
        %v230 = vld [vmem:[%s2 + $0x38] sm:$0xff]
        %232 = vset.pattern.permute.xlu0 0
        %233 = vperm.xlu0 %232, %v223
        %v234 = vpop.permute.xlu0 %233
        %237 = vset.pattern.permute.xlu0 0
        %238 = vperm.xlu0 %237, %v224
        %v239 = vpop.permute.xlu0 %238
        %242 = vset.pattern.permute.xlu0 0
        %243 = vperm.xlu0 %242, %v225
        %v244 = vpop.permute.xlu0 %243
        %247 = vset.pattern.permute.xlu0 0
        %248 = vperm.xlu0 %247, %v226
        %v249 = vpop.permute.xlu0 %248
        %252 = vset.pattern.permute.xlu0 0
        %253 = vperm.xlu0 %252, %v227
        %v254 = vpop.permute.xlu0 %253
        %257 = vset.pattern.permute.xlu0 0
        %258 = vperm.xlu0 %257, %v228
        %v259 = vpop.permute.xlu0 %258
        %262 = vset.pattern.permute.xlu0 0
        %263 = vperm.xlu0 %262, %v229
        %v264 = vpop.permute.xlu0 %263
        %267 = vset.pattern.permute.xlu0 0
        %268 = vperm.xlu0 %267, %v230
        %v269 = vpop.permute.xlu0 %268
        %v279 = vcombine.high %v207, %v207
        %v280 = vcombine.high %v208, %v208
        %v281 = vcombine.high %v209, %v209
        %v282 = vcombine.high %v210, %v210
        %v283 = vcombine.high %v211, %v211
        %v284 = vcombine.high %v212, %v212
        %v285 = vcombine.high %v213, %v213
        %v286 = vcombine.high %v214, %v214
        %vm287 = vcmask 31744
        %v289 = vsel %vm287, %v215, 0
        %v292 = vsel %vm287, %v216, 0
        %v295 = vsel %vm287, %v217, 0
        %v298 = vsel %vm287, %v218, 0
        %v301 = vsel %vm287, %v219, 0
        %v304 = vsel %vm287, %v220, 0
        %v307 = vsel %vm287, %v221, 0
        %v310 = vsel %vm287, %v222, 0
        %vm312 = vcmask 1043456
        %v313 = vsel %vm312, %v207, 0
        %v315 = vsel %vm312, %v279, 0
        %v317 = vsel %vm312, %v208, 0
        %v319 = vsel %vm312, %v280, 0
        %v321 = vsel %vm312, %v209, 0
        %v323 = vsel %vm312, %v281, 0
        %v325 = vsel %vm312, %v210, 0
        %v327 = vsel %vm312, %v282, 0
        %v329 = vsel %vm312, %v211, 0
        %v331 = vsel %vm312, %v283, 0
        %v333 = vsel %vm312, %v212, 0
        %v335 = vsel %vm312, %v284, 0
        %v337 = vsel %vm312, %v213, 0
        %v339 = vsel %vm312, %v285, 0
        %v341 = vsel %vm312, %v214, 0
        %v343 = vsel %vm312, %v286, 0
        %345 = vmatprep.subr.mxu0 %v315
        %346 = vmatpush1.msra.mxu0 %v313
        %347 = vmatprep.subr.mxu0 0.0
        %348 = vmatpush1.msra.mxu0 0.0
        %349 = vmatprep.subr.mxu0 0.0
        %350 = vmatpush1.msra.mxu0 0.0
        %351 = vmatprep.subr.mxu0 0.0
        %352 = vmatpush1.msra.mxu0 0.0
        %353 = vmatprep.subr.mxu0 0.0
        %354 = vmatpush1.msra.mxu0 0.0
        %355 = vmatprep.subr.mxu0 0.0
        %356 = vmatpush1.msra.mxu0 0.0
        %357 = vmatprep.subr.mxu0 0.0
        %358 = vmatpush1.msra.mxu0 0.0
        %359 = vmatprep.subr.mxu0 0.0
        %360 = vmatpush1.msra.mxu0 0.0
        %361 = vmatprep.subr.mxu0 0.0
        %362 = vmatpush1.msra.mxu0 0.0
        %363 = vmatprep.subr.mxu0 0.0
        %364 = vmatpush1.msra.mxu0 0.0
        %365 = vmatprep.subr.mxu0 0.0
        %366 = vmatpush1.msra.mxu0 0.0
        %367 = vmatprep.subr.mxu0 0.0
        %368 = vmatpush1.msra.mxu0 0.0
        %369 = vmatprep.subr.mxu0 0.0
        %370 = vmatpush1.msra.mxu0 0.0
        %371 = vmatprep.subr.mxu0 0.0
        %372 = vmatpush1.msra.mxu0 0.0
        %373 = vmatprep.subr.mxu0 0.0
        %374 = vmatpush1.msra.mxu0 0.0
        %375 = vmatprep.subr.mxu0 0.0
        %376 = vmatpush1.msra.mxu0 0.0
        %377 = vmatprep.subr.mxu0 0.0
        %378 = vmatpush1.msra.mxu0 0.0
        %379 = vmatprep.subr.mxu0 0.0
        %380 = vmatpush1.msra.mxu0 0.0
        %381 = vmatprep.subr.mxu0 0.0
        %382 = vmatpush1.msra.mxu0 0.0
        %383 = vmatprep.subr.mxu0 0.0
        %384 = vmatpush1.msra.mxu0 0.0
        %385 = vmatprep.subr.mxu0 0.0
        %386 = vmatpush1.msra.mxu0 0.0
        %387 = vmatprep.subr.mxu0 0.0
        %388 = vmatpush1.msra.mxu0 0.0
        %389 = vmatprep.subr.mxu0 0.0
        %390 = vmatpush1.msra.mxu0 0.0
        %391 = vmatprep.subr.mxu0 0.0
        %392 = vmatpush1.msra.mxu0 0.0
        %393 = vmatprep.subr.mxu0 0.0
        %394 = vmatpush1.msra.mxu0 0.0
        %395 = vmatprep.subr.mxu0 0.0
        %396 = vmatpush1.msra.mxu0 0.0
        %397 = vmatprep.subr.mxu0 0.0
        %398 = vmatpush1.msra.mxu0 0.0
        %399 = vmatprep.subr.mxu0 0.0
        %400 = vmatpush1.msra.mxu0 0.0
        %401 = vmatprep.subr.mxu0 0.0
        %402 = vmatpush1.msra.mxu0 0.0
        %403 = vmatprep.subr.mxu0 0.0
        %404 = vmatpush1.msra.mxu0 0.0
        %405 = vmatprep.subr.mxu0 0.0
        %406 = vmatpush1.msra.mxu0 0.0
        %407 = vmatprep.subr.mxu0 0.0
        %408 = vmatpush1.msra.mxu0 0.0
        %409 = vmatprep.mubr.f32.mxu0 0.0
        %410 = vmatmul.mubr.f32.gmra.mrb[0].mxu0 %v289
        %v411 = vpop.f32.mrb[0].mxu0
        %v412 = vadd.f32 %v234, %v411
        %v413 = vpop.f32.mrb[0].mxu0
        %v414 = vadd.f32 %v234, %v413
        %415 = vmatprep.mubr.f32.mxu0 0.0
        %416 = vmatmul.mubr.f32.gmra.mrb[0].mxu0 %v292
        %v417 = vpop.f32.mrb[0].mxu0
        %v418 = vadd.f32 %v239, %v417
        %v419 = vpop.f32.mrb[0].mxu0
        %v420 = vadd.f32 %v239, %v419
        %421 = vmatprep.mubr.f32.mxu0 0.0
        %422 = vmatmul.mubr.f32.gmra.mrb[0].mxu0 %v295
        %v423 = vpop.f32.mrb[0].mxu0
        %v424 = vadd.f32 %v244, %v423
        %v425 = vpop.f32.mrb[0].mxu0
        %v426 = vadd.f32 %v244, %v425
        %427 = vmatprep.mubr.f32.mxu0 0.0
        %428 = vmatmul.mubr.f32.gmra.mrb[0].mxu0 %v298
        %v429 = vpop.f32.mrb[0].mxu0
        %v430 = vadd.f32 %v249, %v429
        %v431 = vpop.f32.mrb[0].mxu0
        %v432 = vadd.f32 %v249, %v431
        %433 = vmatprep.mubr.f32.mxu0 0.0
        %434 = vmatmul.mubr.f32.gmra.mrb[0].mxu0 %v301
        %v435 = vpop.f32.mrb[0].mxu0
        %v436 = vadd.f32 %v254, %v435
        %v437 = vpop.f32.mrb[0].mxu0
        %v438 = vadd.f32 %v254, %v437
        %439 = vmatprep.mubr.f32.mxu0 0.0
        %440 = vmatmul.mubr.f32.gmra.mrb[0].mxu0 %v304
        %v441 = vpop.f32.mrb[0].mxu0
        %v442 = vadd.f32 %v259, %v441
        %v443 = vpop.f32.mrb[0].mxu0
        %v444 = vadd.f32 %v259, %v443
        %445 = vmatprep.mubr.f32.mxu0 0.0
        %446 = vmatmul.mubr.f32.gmra.mrb[0].mxu0 %v307
        %v447 = vpop.f32.mrb[0].mxu0
        %v448 = vadd.f32 %v264, %v447
        %v449 = vpop.f32.mrb[0].mxu0
        %v450 = vadd.f32 %v264, %v449
        %451 = vmatprep.mubr.f32.mxu0 0.0
        %452 = vmatmul.mubr.f32.gmra.mrb[0].mxu0 %v310
        %v453 = vpop.f32.mrb[0].mxu0
        %v454 = vadd.f32 %v269, %v453
        %v455 = vpop.f32.mrb[0].mxu0
        %v456 = vadd.f32 %v269, %v455
        %457 = vdwg.mxu0
        %458 = vmatprep.subr.mxu0 %v319
        %459 = vmatpush1.msra.mxu0 %v317
        %460 = vmatprep.subr.mxu0 0.0
        %461 = vmatpush1.msra.mxu0 0.0
        %462 = vmatprep.subr.mxu0 0.0
        %463 = vmatpush1.msra.mxu0 0.0
        %464 = vmatprep.subr.mxu0 0.0
        %465 = vmatpush1.msra.mxu0 0.0
        %466 = vmatprep.subr.mxu0 0.0
        %467 = vmatpush1.msra.mxu0 0.0
        %468 = vmatprep.subr.mxu0 0.0
        %469 = vmatpush1.msra.mxu0 0.0
        %470 = vmatprep.subr.mxu0 0.0
        %471 = vmatpush1.msra.mxu0 0.0
        %472 = vmatprep.subr.mxu0 0.0
        %473 = vmatpush1.msra.mxu0 0.0
        %474 = vmatprep.subr.mxu0 0.0
        %475 = vmatpush1.msra.mxu0 0.0
        %476 = vmatprep.subr.mxu0 0.0
        %477 = vmatpush1.msra.mxu0 0.0
        %478 = vmatprep.subr.mxu0 0.0
        %479 = vmatpush1.msra.mxu0 0.0
        %480 = vmatprep.subr.mxu0 0.0
        %481 = vmatpush1.msra.mxu0 0.0
        %482 = vmatprep.subr.mxu0 0.0
        %483 = vmatpush1.msra.mxu0 0.0
        %484 = vmatprep.subr.mxu0 0.0
        %485 = vmatpush1.msra.mxu0 0.0
        %486 = vmatprep.subr.mxu0 0.0
        %487 = vmatpush1.msra.mxu0 0.0
        %488 = vmatprep.subr.mxu0 0.0
        %489 = vmatpush1.msra.mxu0 0.0
        %490 = vmatprep.subr.mxu0 0.0
        %491 = vmatpush1.msra.mxu0 0.0
        %492 = vmatprep.subr.mxu0 0.0
        %493 = vmatpush1.msra.mxu0 0.0
        %494 = vmatprep.subr.mxu0 0.0
        %495 = vmatpush1.msra.mxu0 0.0
        %496 = vmatprep.subr.mxu0 0.0
        %497 = vmatpush1.msra.mxu0 0.0
        %498 = vmatprep.subr.mxu0 0.0
        %499 = vmatpush1.msra.mxu0 0.0
        %500 = vmatprep.subr.mxu0 0.0
        %501 = vmatpush1.msra.mxu0 0.0
        %502 = vmatprep.subr.mxu0 0.0
        %503 = vmatpush1.msra.mxu0 0.0
        %504 = vmatprep.subr.mxu0 0.0
        %505 = vmatpush1.msra.mxu0 0.0
        %506 = vmatprep.subr.mxu0 0.0
        %507 = vmatpush1.msra.mxu0 0.0
        %508 = vmatprep.subr.mxu0 0.0
        %509 = vmatpush1.msra.mxu0 0.0
        %510 = vmatprep.subr.mxu0 0.0
        %511 = vmatpush1.msra.mxu0 0.0
        %512 = vmatprep.subr.mxu0 0.0
        %513 = vmatpush1.msra.mxu0 0.0
        %514 = vmatprep.subr.mxu0 0.0
        %515 = vmatpush1.msra.mxu0 0.0
        %516 = vmatprep.subr.mxu0 0.0
        %517 = vmatpush1.msra.mxu0 0.0
        %518 = vmatprep.subr.mxu0 0.0
        %519 = vmatpush1.msra.mxu0 0.0
        %520 = vmatprep.subr.mxu0 0.0
        %521 = vmatpush1.msra.mxu0 0.0
        %522 = vmatprep.mubr.f32.mxu0 0.0
        %523 = vmatmul.mubr.f32.gmra.mrb[0].mxu0 %v289
        %v524 = vpop.f32.mrb[0].mxu0
        %v525 = vadd.f32 %v234, %v524
        %v526 = vpop.f32.mrb[0].mxu0
        %v527 = vadd.f32 %v234, %v526
        %528 = vmatprep.mubr.f32.mxu0 0.0
        %529 = vmatmul.mubr.f32.gmra.mrb[0].mxu0 %v292
        %v530 = vpop.f32.mrb[0].mxu0
        %v531 = vadd.f32 %v239, %v530
        %v532 = vpop.f32.mrb[0].mxu0
        %v533 = vadd.f32 %v239, %v532
        %534 = vmatprep.mubr.f32.mxu0 0.0
        %535 = vmatmul.mubr.f32.gmra.mrb[0].mxu0 %v295
        %v536 = vpop.f32.mrb[0].mxu0
        %v537 = vadd.f32 %v244, %v536
        %v538 = vpop.f32.mrb[0].mxu0
        %v539 = vadd.f32 %v244, %v538
        %540 = vmatprep.mubr.f32.mxu0 0.0
        %541 = vmatmul.mubr.f32.gmra.mrb[0].mxu0 %v298
        %v542 = vpop.f32.mrb[0].mxu0
        %v543 = vadd.f32 %v249, %v542
        %v544 = vpop.f32.mrb[0].mxu0
        %v545 = vadd.f32 %v249, %v544
        %546 = vmatprep.mubr.f32.mxu0 0.0
        %547 = vmatmul.mubr.f32.gmra.mrb[0].mxu0 %v301
        %v548 = vpop.f32.mrb[0].mxu0
        %v549 = vadd.f32 %v254, %v548
        %v550 = vpop.f32.mrb[0].mxu0
        %v551 = vadd.f32 %v254, %v550
        %552 = vmatprep.mubr.f32.mxu0 0.0
        %553 = vmatmul.mubr.f32.gmra.mrb[0].mxu0 %v304
        %v554 = vpop.f32.mrb[0].mxu0
        %v555 = vadd.f32 %v259, %v554
        %v556 = vpop.f32.mrb[0].mxu0
        %v557 = vadd.f32 %v259, %v556
        %558 = vmatprep.mubr.f32.mxu0 0.0
        %559 = vmatmul.mubr.f32.gmra.mrb[0].mxu0 %v307
        %v560 = vpop.f32.mrb[0].mxu0
        %v561 = vadd.f32 %v264, %v560
        %v562 = vpop.f32.mrb[0].mxu0
        %v563 = vadd.f32 %v264, %v562
        %564 = vmatprep.mubr.f32.mxu0 0.0
        %565 = vmatmul.mubr.f32.gmra.mrb[0].mxu0 %v310
        %v566 = vpop.f32.mrb[0].mxu0
        %v567 = vadd.f32 %v269, %v566
        %v568 = vpop.f32.mrb[0].mxu0
        %v569 = vadd.f32 %v269, %v568
        %570 = vdwg.mxu0
        %571 = vmatprep.subr.mxu0 %v323
        %572 = vmatpush1.msra.mxu0 %v321
        %573 = vmatprep.subr.mxu0 0.0
        %574 = vmatpush1.msra.mxu0 0.0
        %575 = vmatprep.subr.mxu0 0.0
        %576 = vmatpush1.msra.mxu0 0.0
        %577 = vmatprep.subr.mxu0 0.0
        %578 = vmatpush1.msra.mxu0 0.0
        %579 = vmatprep.subr.mxu0 0.0
        %580 = vmatpush1.msra.mxu0 0.0
        %581 = vmatprep.subr.mxu0 0.0
        %582 = vmatpush1.msra.mxu0 0.0
        %583 = vmatprep.subr.mxu0 0.0
        %584 = vmatpush1.msra.mxu0 0.0
        %585 = vmatprep.subr.mxu0 0.0
        %586 = vmatpush1.msra.mxu0 0.0
        %587 = vmatprep.subr.mxu0 0.0
        %588 = vmatpush1.msra.mxu0 0.0
        %589 = vmatprep.subr.mxu0 0.0
        %590 = vmatpush1.msra.mxu0 0.0
        %591 = vmatprep.subr.mxu0 0.0
        %592 = vmatpush1.msra.mxu0 0.0
        %593 = vmatprep.subr.mxu0 0.0
        %594 = vmatpush1.msra.mxu0 0.0
        %595 = vmatprep.subr.mxu0 0.0
        %596 = vmatpush1.msra.mxu0 0.0
        %597 = vmatprep.subr.mxu0 0.0
        %598 = vmatpush1.msra.mxu0 0.0
        %599 = vmatprep.subr.mxu0 0.0
        %600 = vmatpush1.msra.mxu0 0.0
        %601 = vmatprep.subr.mxu0 0.0
        %602 = vmatpush1.msra.mxu0 0.0
        %603 = vmatprep.subr.mxu0 0.0
        %604 = vmatpush1.msra.mxu0 0.0
        %605 = vmatprep.subr.mxu0 0.0
        %606 = vmatpush1.msra.mxu0 0.0
        %607 = vmatprep.subr.mxu0 0.0
        %608 = vmatpush1.msra.mxu0 0.0
        %609 = vmatprep.subr.mxu0 0.0
        %610 = vmatpush1.msra.mxu0 0.0
        %611 = vmatprep.subr.mxu0 0.0
        %612 = vmatpush1.msra.mxu0 0.0
        %613 = vmatprep.subr.mxu0 0.0
        %614 = vmatpush1.msra.mxu0 0.0
        %615 = vmatprep.subr.mxu0 0.0
        %616 = vmatpush1.msra.mxu0 0.0
        %617 = vmatprep.subr.mxu0 0.0
        %618 = vmatpush1.msra.mxu0 0.0
        %619 = vmatprep.subr.mxu0 0.0
        %620 = vmatpush1.msra.mxu0 0.0
        %621 = vmatprep.subr.mxu0 0.0
        %622 = vmatpush1.msra.mxu0 0.0
        %623 = vmatprep.subr.mxu0 0.0
        %624 = vmatpush1.msra.mxu0 0.0
        %625 = vmatprep.subr.mxu0 0.0
        %626 = vmatpush1.msra.mxu0 0.0
        %627 = vmatprep.subr.mxu0 0.0
        %628 = vmatpush1.msra.mxu0 0.0
        %629 = vmatprep.subr.mxu0 0.0
        %630 = vmatpush1.msra.mxu0 0.0
        %631 = vmatprep.subr.mxu0 0.0
        %632 = vmatpush1.msra.mxu0 0.0
        %633 = vmatprep.subr.mxu0 0.0
        %634 = vmatpush1.msra.mxu0 0.0
        %635 = vmatprep.mubr.f32.mxu0 0.0
        %636 = vmatmul.mubr.f32.gmra.mrb[0].mxu0 %v289
        %v637 = vpop.f32.mrb[0].mxu0
        %v638 = vadd.f32 %v234, %v637
        %v639 = vpop.f32.mrb[0].mxu0
        %v640 = vadd.f32 %v234, %v639
        %641 = vmatprep.mubr.f32.mxu0 0.0
        %642 = vmatmul.mubr.f32.gmra.mrb[0].mxu0 %v292
        %v643 = vpop.f32.mrb[0].mxu0
        %v644 = vadd.f32 %v239, %v643
        %v645 = vpop.f32.mrb[0].mxu0
        %v646 = vadd.f32 %v239, %v645
        %647 = vmatprep.mubr.f32.mxu0 0.0
        %648 = vmatmul.mubr.f32.gmra.mrb[0].mxu0 %v295
        %v649 = vpop.f32.mrb[0].mxu0
        %v650 = vadd.f32 %v244, %v649
        %v651 = vpop.f32.mrb[0].mxu0
        %v652 = vadd.f32 %v244, %v651
        %653 = vmatprep.mubr.f32.mxu0 0.0
        %654 = vmatmul.mubr.f32.gmra.mrb[0].mxu0 %v298
        %v655 = vpop.f32.mrb[0].mxu0
        %v656 = vadd.f32 %v249, %v655
        %v657 = vpop.f32.mrb[0].mxu0
        %v658 = vadd.f32 %v249, %v657
        %659 = vmatprep.mubr.f32.mxu0 0.0
        %660 = vmatmul.mubr.f32.gmra.mrb[0].mxu0 %v301
        %v661 = vpop.f32.mrb[0].mxu0
        %v662 = vadd.f32 %v254, %v661
        %v663 = vpop.f32.mrb[0].mxu0
        %v664 = vadd.f32 %v254, %v663
        %665 = vmatprep.mubr.f32.mxu0 0.0
        %666 = vmatmul.mubr.f32.gmra.mrb[0].mxu0 %v304
        %v667 = vpop.f32.mrb[0].mxu0
        %v668 = vadd.f32 %v259, %v667
        %v669 = vpop.f32.mrb[0].mxu0
        %v670 = vadd.f32 %v259, %v669
        %671 = vmatprep.mubr.f32.mxu0 0.0
        %672 = vmatmul.mubr.f32.gmra.mrb[0].mxu0 %v307
        %v673 = vpop.f32.mrb[0].mxu0
        %v674 = vadd.f32 %v264, %v673
        %v675 = vpop.f32.mrb[0].mxu0
        %v676 = vadd.f32 %v264, %v675
        %677 = vmatprep.mubr.f32.mxu0 0.0
        %678 = vmatmul.mubr.f32.gmra.mrb[0].mxu0 %v310
        %v679 = vpop.f32.mrb[0].mxu0
        %v680 = vadd.f32 %v269, %v679
        %v681 = vpop.f32.mrb[0].mxu0
        %v682 = vadd.f32 %v269, %v681
        %683 = vdwg.mxu0
        %684 = vmatprep.subr.mxu0 %v327
        %685 = vmatpush1.msra.mxu0 %v325
        %686 = vmatprep.subr.mxu0 0.0
        %687 = vmatpush1.msra.mxu0 0.0
        %688 = vmatprep.subr.mxu0 0.0
        %689 = vmatpush1.msra.mxu0 0.0
        %690 = vmatprep.subr.mxu0 0.0
        %691 = vmatpush1.msra.mxu0 0.0
        %692 = vmatprep.subr.mxu0 0.0
        %693 = vmatpush1.msra.mxu0 0.0
        %694 = vmatprep.subr.mxu0 0.0
        %695 = vmatpush1.msra.mxu0 0.0
        %696 = vmatprep.subr.mxu0 0.0
        %697 = vmatpush1.msra.mxu0 0.0
        %698 = vmatprep.subr.mxu0 0.0
        %699 = vmatpush1.msra.mxu0 0.0
        %700 = vmatprep.subr.mxu0 0.0
        %701 = vmatpush1.msra.mxu0 0.0
        %702 = vmatprep.subr.mxu0 0.0
        %703 = vmatpush1.msra.mxu0 0.0
        %704 = vmatprep.subr.mxu0 0.0
        %705 = vmatpush1.msra.mxu0 0.0
        %706 = vmatprep.subr.mxu0 0.0
        %707 = vmatpush1.msra.mxu0 0.0
        %708 = vmatprep.subr.mxu0 0.0
        %709 = vmatpush1.msra.mxu0 0.0
        %710 = vmatprep.subr.mxu0 0.0
        %711 = vmatpush1.msra.mxu0 0.0
        %712 = vmatprep.subr.mxu0 0.0
        %713 = vmatpush1.msra.mxu0 0.0
        %714 = vmatprep.subr.mxu0 0.0
        %715 = vmatpush1.msra.mxu0 0.0
        %716 = vmatprep.subr.mxu0 0.0
        %717 = vmatpush1.msra.mxu0 0.0
        %718 = vmatprep.subr.mxu0 0.0
        %719 = vmatpush1.msra.mxu0 0.0
        %720 = vmatprep.subr.mxu0 0.0
        %721 = vmatpush1.msra.mxu0 0.0
        %722 = vmatprep.subr.mxu0 0.0
        %723 = vmatpush1.msra.mxu0 0.0
        %724 = vmatprep.subr.mxu0 0.0
        %725 = vmatpush1.msra.mxu0 0.0
        %726 = vmatprep.subr.mxu0 0.0
        %727 = vmatpush1.msra.mxu0 0.0
        %728 = vmatprep.subr.mxu0 0.0
        %729 = vmatpush1.msra.mxu0 0.0
        %730 = vmatprep.subr.mxu0 0.0
        %731 = vmatpush1.msra.mxu0 0.0
        %732 = vmatprep.subr.mxu0 0.0
        %733 = vmatpush1.msra.mxu0 0.0
        %734 = vmatprep.subr.mxu0 0.0
        %735 = vmatpush1.msra.mxu0 0.0
        %736 = vmatprep.subr.mxu0 0.0
        %737 = vmatpush1.msra.mxu0 0.0
        %738 = vmatprep.subr.mxu0 0.0
        %739 = vmatpush1.msra.mxu0 0.0
        %740 = vmatprep.subr.mxu0 0.0
        %741 = vmatpush1.msra.mxu0 0.0
        %742 = vmatprep.subr.mxu0 0.0
        %743 = vmatpush1.msra.mxu0 0.0
        %744 = vmatprep.subr.mxu0 0.0
        %745 = vmatpush1.msra.mxu0 0.0
        %746 = vmatprep.subr.mxu0 0.0
        %747 = vmatpush1.msra.mxu0 0.0
        %748 = vmatprep.mubr.f32.mxu0 0.0
        %749 = vmatmul.mubr.f32.gmra.mrb[0].mxu0 %v289
        %v750 = vpop.f32.mrb[0].mxu0
        %v751 = vadd.f32 %v234, %v750
        %v752 = vpop.f32.mrb[0].mxu0
        %v753 = vadd.f32 %v234, %v752
        %754 = vmatprep.mubr.f32.mxu0 0.0
        %755 = vmatmul.mubr.f32.gmra.mrb[0].mxu0 %v292
        %v756 = vpop.f32.mrb[0].mxu0
        %v757 = vadd.f32 %v239, %v756
        %v758 = vpop.f32.mrb[0].mxu0
        %v759 = vadd.f32 %v239, %v758
        %760 = vmatprep.mubr.f32.mxu0 0.0
        %761 = vmatmul.mubr.f32.gmra.mrb[0].mxu0 %v295
        %v762 = vpop.f32.mrb[0].mxu0
        %v763 = vadd.f32 %v244, %v762
        %v764 = vpop.f32.mrb[0].mxu0
        %v765 = vadd.f32 %v244, %v764
        %766 = vmatprep.mubr.f32.mxu0 0.0
        %767 = vmatmul.mubr.f32.gmra.mrb[0].mxu0 %v298
        %v768 = vpop.f32.mrb[0].mxu0
        %v769 = vadd.f32 %v249, %v768
        %v770 = vpop.f32.mrb[0].mxu0
        %v771 = vadd.f32 %v249, %v770
        %772 = vmatprep.mubr.f32.mxu0 0.0
        %773 = vmatmul.mubr.f32.gmra.mrb[0].mxu0 %v301
        %v774 = vpop.f32.mrb[0].mxu0
        %v775 = vadd.f32 %v254, %v774
        %v776 = vpop.f32.mrb[0].mxu0
        %v777 = vadd.f32 %v254, %v776
        %778 = vmatprep.mubr.f32.mxu0 0.0
        %779 = vmatmul.mubr.f32.gmra.mrb[0].mxu0 %v304
        %v780 = vpop.f32.mrb[0].mxu0
        %v781 = vadd.f32 %v259, %v780
        %v782 = vpop.f32.mrb[0].mxu0
        %v783 = vadd.f32 %v259, %v782
        %784 = vmatprep.mubr.f32.mxu0 0.0
        %785 = vmatmul.mubr.f32.gmra.mrb[0].mxu0 %v307
        %v786 = vpop.f32.mrb[0].mxu0
        %v787 = vadd.f32 %v264, %v786
        %v788 = vpop.f32.mrb[0].mxu0
        %v789 = vadd.f32 %v264, %v788
        %790 = vmatprep.mubr.f32.mxu0 0.0
        %791 = vmatmul.mubr.f32.gmra.mrb[0].mxu0 %v310
        %v792 = vpop.f32.mrb[0].mxu0
        %v793 = vadd.f32 %v269, %v792
        %v794 = vpop.f32.mrb[0].mxu0
        %v795 = vadd.f32 %v269, %v794
        %796 = vdwg.mxu0
        %797 = vmatprep.subr.mxu0 %v331
        %798 = vmatpush1.msra.mxu0 %v329
        %799 = vmatprep.subr.mxu0 0.0
        %800 = vmatpush1.msra.mxu0 0.0
        %801 = vmatprep.subr.mxu0 0.0
        %802 = vmatpush1.msra.mxu0 0.0
        %803 = vmatprep.subr.mxu0 0.0
        %804 = vmatpush1.msra.mxu0 0.0
        %805 = vmatprep.subr.mxu0 0.0
        %806 = vmatpush1.msra.mxu0 0.0
        %807 = vmatprep.subr.mxu0 0.0
        %808 = vmatpush1.msra.mxu0 0.0
        %809 = vmatprep.subr.mxu0 0.0
        %810 = vmatpush1.msra.mxu0 0.0
        %811 = vmatprep.subr.mxu0 0.0
        %812 = vmatpush1.msra.mxu0 0.0
        %813 = vmatprep.subr.mxu0 0.0
        %814 = vmatpush1.msra.mxu0 0.0
        %815 = vmatprep.subr.mxu0 0.0
        %816 = vmatpush1.msra.mxu0 0.0
        %817 = vmatprep.subr.mxu0 0.0
        %818 = vmatpush1.msra.mxu0 0.0
        %819 = vmatprep.subr.mxu0 0.0
        %820 = vmatpush1.msra.mxu0 0.0
        %821 = vmatprep.subr.mxu0 0.0
        %822 = vmatpush1.msra.mxu0 0.0
        %823 = vmatprep.subr.mxu0 0.0
        %824 = vmatpush1.msra.mxu0 0.0
        %825 = vmatprep.subr.mxu0 0.0
        %826 = vmatpush1.msra.mxu0 0.0
        %827 = vmatprep.subr.mxu0 0.0
        %828 = vmatpush1.msra.mxu0 0.0
        %829 = vmatprep.subr.mxu0 0.0
        %830 = vmatpush1.msra.mxu0 0.0
        %831 = vmatprep.subr.mxu0 0.0
        %832 = vmatpush1.msra.mxu0 0.0
        %833 = vmatprep.subr.mxu0 0.0
        %834 = vmatpush1.msra.mxu0 0.0
        %835 = vmatprep.subr.mxu0 0.0
        %836 = vmatpush1.msra.mxu0 0.0
        %837 = vmatprep.subr.mxu0 0.0
        %838 = vmatpush1.msra.mxu0 0.0
        %839 = vmatprep.subr.mxu0 0.0
        %840 = vmatpush1.msra.mxu0 0.0
        %841 = vmatprep.subr.mxu0 0.0
        %842 = vmatpush1.msra.mxu0 0.0
        %843 = vmatprep.subr.mxu0 0.0
        %844 = vmatpush1.msra.mxu0 0.0
        %845 = vmatprep.subr.mxu0 0.0
        %846 = vmatpush1.msra.mxu0 0.0
        %847 = vmatprep.subr.mxu0 0.0
        %848 = vmatpush1.msra.mxu0 0.0
        %849 = vmatprep.subr.mxu0 0.0
        %850 = vmatpush1.msra.mxu0 0.0
        %851 = vmatprep.subr.mxu0 0.0
        %852 = vmatpush1.msra.mxu0 0.0
        %853 = vmatprep.subr.mxu0 0.0
        %854 = vmatpush1.msra.mxu0 0.0
        %855 = vmatprep.subr.mxu0 0.0
        %856 = vmatpush1.msra.mxu0 0.0
        %857 = vmatprep.subr.mxu0 0.0
        %858 = vmatpush1.msra.mxu0 0.0
        %859 = vmatprep.subr.mxu0 0.0
        %860 = vmatpush1.msra.mxu0 0.0
        %861 = vmatprep.mubr.f32.mxu0 0.0
        %862 = vmatmul.mubr.f32.gmra.mrb[0].mxu0 %v289
        %v863 = vpop.f32.mrb[0].mxu0
        %v864 = vadd.f32 %v234, %v863
        %v865 = vpop.f32.mrb[0].mxu0
        %v866 = vadd.f32 %v234, %v865
        %867 = vmatprep.mubr.f32.mxu0 0.0
        %868 = vmatmul.mubr.f32.gmra.mrb[0].mxu0 %v292
        %v869 = vpop.f32.mrb[0].mxu0
        %v870 = vadd.f32 %v239, %v869
        %v871 = vpop.f32.mrb[0].mxu0
        %v872 = vadd.f32 %v239, %v871
        %873 = vmatprep.mubr.f32.mxu0 0.0
        %874 = vmatmul.mubr.f32.gmra.mrb[0].mxu0 %v295
        %v875 = vpop.f32.mrb[0].mxu0
        %v876 = vadd.f32 %v244, %v875
        %v877 = vpop.f32.mrb[0].mxu0
        %v878 = vadd.f32 %v244, %v877
        %879 = vmatprep.mubr.f32.mxu0 0.0
        %880 = vmatmul.mubr.f32.gmra.mrb[0].mxu0 %v298
        %v881 = vpop.f32.mrb[0].mxu0
        %v882 = vadd.f32 %v249, %v881
        %v883 = vpop.f32.mrb[0].mxu0
        %v884 = vadd.f32 %v249, %v883
        %885 = vmatprep.mubr.f32.mxu0 0.0
        %886 = vmatmul.mubr.f32.gmra.mrb[0].mxu0 %v301
        %v887 = vpop.f32.mrb[0].mxu0
        %v888 = vadd.f32 %v254, %v887
        %v889 = vpop.f32.mrb[0].mxu0
        %v890 = vadd.f32 %v254, %v889
        %891 = vmatprep.mubr.f32.mxu0 0.0
        %892 = vmatmul.mubr.f32.gmra.mrb[0].mxu0 %v304
        %v893 = vpop.f32.mrb[0].mxu0
        %v894 = vadd.f32 %v259, %v893
        %v895 = vpop.f32.mrb[0].mxu0
        %v896 = vadd.f32 %v259, %v895
        %897 = vmatprep.mubr.f32.mxu0 0.0
        %898 = vmatmul.mubr.f32.gmra.mrb[0].mxu0 %v307
        %v899 = vpop.f32.mrb[0].mxu0
        %v900 = vadd.f32 %v264, %v899
        %v901 = vpop.f32.mrb[0].mxu0
        %v902 = vadd.f32 %v264, %v901
        %903 = vmatprep.mubr.f32.mxu0 0.0
        %904 = vmatmul.mubr.f32.gmra.mrb[0].mxu0 %v310
        %v905 = vpop.f32.mrb[0].mxu0
        %v906 = vadd.f32 %v269, %v905
        %v907 = vpop.f32.mrb[0].mxu0
        %v908 = vadd.f32 %v269, %v907
        %909 = vdwg.mxu0
        %910 = vmatprep.subr.mxu0 %v335
        %911 = vmatpush1.msra.mxu0 %v333
        %912 = vmatprep.subr.mxu0 0.0
        %913 = vmatpush1.msra.mxu0 0.0
        %914 = vmatprep.subr.mxu0 0.0
        %915 = vmatpush1.msra.mxu0 0.0
        %916 = vmatprep.subr.mxu0 0.0
        %917 = vmatpush1.msra.mxu0 0.0
        %918 = vmatprep.subr.mxu0 0.0
        %919 = vmatpush1.msra.mxu0 0.0
        %920 = vmatprep.subr.mxu0 0.0
        %921 = vmatpush1.msra.mxu0 0.0
        %922 = vmatprep.subr.mxu0 0.0
        %923 = vmatpush1.msra.mxu0 0.0
        %924 = vmatprep.subr.mxu0 0.0
        %925 = vmatpush1.msra.mxu0 0.0
        %926 = vmatprep.subr.mxu0 0.0
        %927 = vmatpush1.msra.mxu0 0.0
        %928 = vmatprep.subr.mxu0 0.0
        %929 = vmatpush1.msra.mxu0 0.0
        %930 = vmatprep.subr.mxu0 0.0
        %931 = vmatpush1.msra.mxu0 0.0
        %932 = vmatprep.subr.mxu0 0.0
        %933 = vmatpush1.msra.mxu0 0.0
        %934 = vmatprep.subr.mxu0 0.0
        %935 = vmatpush1.msra.mxu0 0.0
        %936 = vmatprep.subr.mxu0 0.0
        %937 = vmatpush1.msra.mxu0 0.0
        %938 = vmatprep.subr.mxu0 0.0
        %939 = vmatpush1.msra.mxu0 0.0
        %940 = vmatprep.subr.mxu0 0.0
        %941 = vmatpush1.msra.mxu0 0.0
        %942 = vmatprep.subr.mxu0 0.0
        %943 = vmatpush1.msra.mxu0 0.0
        %944 = vmatprep.subr.mxu0 0.0
        %945 = vmatpush1.msra.mxu0 0.0
        %946 = vmatprep.subr.mxu0 0.0
        %947 = vmatpush1.msra.mxu0 0.0
        %948 = vmatprep.subr.mxu0 0.0
        %949 = vmatpush1.msra.mxu0 0.0
        %950 = vmatprep.subr.mxu0 0.0
        %951 = vmatpush1.msra.mxu0 0.0
        %952 = vmatprep.subr.mxu0 0.0
        %953 = vmatpush1.msra.mxu0 0.0
        %954 = vmatprep.subr.mxu0 0.0
        %955 = vmatpush1.msra.mxu0 0.0
        %956 = vmatprep.subr.mxu0 0.0
        %957 = vmatpush1.msra.mxu0 0.0
        %958 = vmatprep.subr.mxu0 0.0
        %959 = vmatpush1.msra.mxu0 0.0
        %960 = vmatprep.subr.mxu0 0.0
        %961 = vmatpush1.msra.mxu0 0.0
        %962 = vmatprep.subr.mxu0 0.0
        %963 = vmatpush1.msra.mxu0 0.0
        %964 = vmatprep.subr.mxu0 0.0
        %965 = vmatpush1.msra.mxu0 0.0
        %966 = vmatprep.subr.mxu0 0.0
        %967 = vmatpush1.msra.mxu0 0.0
        %968 = vmatprep.subr.mxu0 0.0
        %969 = vmatpush1.msra.mxu0 0.0
        %970 = vmatprep.subr.mxu0 0.0
        %971 = vmatpush1.msra.mxu0 0.0
        %972 = vmatprep.subr.mxu0 0.0
        %973 = vmatpush1.msra.mxu0 0.0
        %974 = vmatprep.mubr.f32.mxu0 0.0
        %975 = vmatmul.mubr.f32.gmra.mrb[0].mxu0 %v289
        %v976 = vpop.f32.mrb[0].mxu0
        %v977 = vadd.f32 %v234, %v976
        %v978 = vpop.f32.mrb[0].mxu0
        %v979 = vadd.f32 %v234, %v978
        %980 = vmatprep.mubr.f32.mxu0 0.0
        %981 = vmatmul.mubr.f32.gmra.mrb[0].mxu0 %v292
        %v982 = vpop.f32.mrb[0].mxu0
        %v983 = vadd.f32 %v239, %v982
        %v984 = vpop.f32.mrb[0].mxu0
        %v985 = vadd.f32 %v239, %v984
        %986 = vmatprep.mubr.f32.mxu0 0.0
        %987 = vmatmul.mubr.f32.gmra.mrb[0].mxu0 %v295
        %v988 = vpop.f32.mrb[0].mxu0
        %v989 = vadd.f32 %v244, %v988
        %v990 = vpop.f32.mrb[0].mxu0
        %v991 = vadd.f32 %v244, %v990
        %992 = vmatprep.mubr.f32.mxu0 0.0
        %993 = vmatmul.mubr.f32.gmra.mrb[0].mxu0 %v298
        %v994 = vpop.f32.mrb[0].mxu0
        %v995 = vadd.f32 %v249, %v994
        %v996 = vpop.f32.mrb[0].mxu0
        %v997 = vadd.f32 %v249, %v996
        %998 = vmatprep.mubr.f32.mxu0 0.0
        %999 = vmatmul.mubr.f32.gmra.mrb[0].mxu0 %v301
        %v1000 = vpop.f32.mrb[0].mxu0
        %v1001 = vadd.f32 %v254, %v1000
        %v1002 = vpop.f32.mrb[0].mxu0
        %v1003 = vadd.f32 %v254, %v1002
        %1004 = vmatprep.mubr.f32.mxu0 0.0
        %1005 = vmatmul.mubr.f32.gmra.mrb[0].mxu0 %v304
        %v1006 = vpop.f32.mrb[0].mxu0
        %v1007 = vadd.f32 %v259, %v1006
        %v1008 = vpop.f32.mrb[0].mxu0
        %v1009 = vadd.f32 %v259, %v1008
        %1010 = vmatprep.mubr.f32.mxu0 0.0
        %1011 = vmatmul.mubr.f32.gmra.mrb[0].mxu0 %v307
        %v1012 = vpop.f32.mrb[0].mxu0
        %v1013 = vadd.f32 %v264, %v1012
        %v1014 = vpop.f32.mrb[0].mxu0
        %v1015 = vadd.f32 %v264, %v1014
        %1016 = vmatprep.mubr.f32.mxu0 0.0
        %1017 = vmatmul.mubr.f32.gmra.mrb[0].mxu0 %v310
        %v1018 = vpop.f32.mrb[0].mxu0
        %v1019 = vadd.f32 %v269, %v1018
        %v1020 = vpop.f32.mrb[0].mxu0
        %v1021 = vadd.f32 %v269, %v1020
        %1022 = vdwg.mxu0
        %1023 = vmatprep.subr.mxu0 %v339
        %1024 = vmatpush1.msra.mxu0 %v337
        %1025 = vmatprep.subr.mxu0 0.0
        %1026 = vmatpush1.msra.mxu0 0.0
        %1027 = vmatprep.subr.mxu0 0.0
        %1028 = vmatpush1.msra.mxu0 0.0
        %1029 = vmatprep.subr.mxu0 0.0
        %1030 = vmatpush1.msra.mxu0 0.0
        %1031 = vmatprep.subr.mxu0 0.0
        %1032 = vmatpush1.msra.mxu0 0.0
        %1033 = vmatprep.subr.mxu0 0.0
        %1034 = vmatpush1.msra.mxu0 0.0
        %1035 = vmatprep.subr.mxu0 0.0
        %1036 = vmatpush1.msra.mxu0 0.0
        %1037 = vmatprep.subr.mxu0 0.0
        %1038 = vmatpush1.msra.mxu0 0.0
        %1039 = vmatprep.subr.mxu0 0.0
        %1040 = vmatpush1.msra.mxu0 0.0
        %1041 = vmatprep.subr.mxu0 0.0
        %1042 = vmatpush1.msra.mxu0 0.0
        %1043 = vmatprep.subr.mxu0 0.0
        %1044 = vmatpush1.msra.mxu0 0.0
        %1045 = vmatprep.subr.mxu0 0.0
        %1046 = vmatpush1.msra.mxu0 0.0
        %1047 = vmatprep.subr.mxu0 0.0
        %1048 = vmatpush1.msra.mxu0 0.0
        %1049 = vmatprep.subr.mxu0 0.0
        %1050 = vmatpush1.msra.mxu0 0.0
        %1051 = vmatprep.subr.mxu0 0.0
        %1052 = vmatpush1.msra.mxu0 0.0
        %1053 = vmatprep.subr.mxu0 0.0
        %1054 = vmatpush1.msra.mxu0 0.0
        %1055 = vmatprep.subr.mxu0 0.0
        %1056 = vmatpush1.msra.mxu0 0.0
        %1057 = vmatprep.subr.mxu0 0.0
        %1058 = vmatpush1.msra.mxu0 0.0
        %1059 = vmatprep.subr.mxu0 0.0
        %1060 = vmatpush1.msra.mxu0 0.0
        %1061 = vmatprep.subr.mxu0 0.0
        %1062 = vmatpush1.msra.mxu0 0.0
        %1063 = vmatprep.subr.mxu0 0.0
        %1064 = vmatpush1.msra.mxu0 0.0
        %1065 = vmatprep.subr.mxu0 0.0
        %1066 = vmatpush1.msra.mxu0 0.0
        %1067 = vmatprep.subr.mxu0 0.0
        %1068 = vmatpush1.msra.mxu0 0.0
        %1069 = vmatprep.subr.mxu0 0.0
        %1070 = vmatpush1.msra.mxu0 0.0
        %1071 = vmatprep.subr.mxu0 0.0
        %1072 = vmatpush1.msra.mxu0 0.0
        %1073 = vmatprep.subr.mxu0 0.0
        %1074 = vmatpush1.msra.mxu0 0.0
        %1075 = vmatprep.subr.mxu0 0.0
        %1076 = vmatpush1.msra.mxu0 0.0
        %1077 = vmatprep.subr.mxu0 0.0
        %1078 = vmatpush1.msra.mxu0 0.0
        %1079 = vmatprep.subr.mxu0 0.0
        %1080 = vmatpush1.msra.mxu0 0.0
        %1081 = vmatprep.subr.mxu0 0.0
        %1082 = vmatpush1.msra.mxu0 0.0
        %1083 = vmatprep.subr.mxu0 0.0
        %1084 = vmatpush1.msra.mxu0 0.0
        %1085 = vmatprep.subr.mxu0 0.0
        %1086 = vmatpush1.msra.mxu0 0.0
        %1087 = vmatprep.mubr.f32.mxu0 0.0
        %1088 = vmatmul.mubr.f32.gmra.mrb[0].mxu0 %v289
        %v1089 = vpop.f32.mrb[0].mxu0
        %v1090 = vadd.f32 %v234, %v1089
        %v1091 = vpop.f32.mrb[0].mxu0
        %v1092 = vadd.f32 %v234, %v1091
        %1093 = vmatprep.mubr.f32.mxu0 0.0
        %1094 = vmatmul.mubr.f32.gmra.mrb[0].mxu0 %v292
        %v1095 = vpop.f32.mrb[0].mxu0
        %v1096 = vadd.f32 %v239, %v1095
        %v1097 = vpop.f32.mrb[0].mxu0
        %v1098 = vadd.f32 %v239, %v1097
        %1099 = vmatprep.mubr.f32.mxu0 0.0
        %1100 = vmatmul.mubr.f32.gmra.mrb[0].mxu0 %v295
        %v1101 = vpop.f32.mrb[0].mxu0
        %v1102 = vadd.f32 %v244, %v1101
        %v1103 = vpop.f32.mrb[0].mxu0
        %v1104 = vadd.f32 %v244, %v1103
        %1105 = vmatprep.mubr.f32.mxu0 0.0
        %1106 = vmatmul.mubr.f32.gmra.mrb[0].mxu0 %v298
        %v1107 = vpop.f32.mrb[0].mxu0
        %v1108 = vadd.f32 %v249, %v1107
        %v1109 = vpop.f32.mrb[0].mxu0
        %v1110 = vadd.f32 %v249, %v1109
        %1111 = vmatprep.mubr.f32.mxu0 0.0
        %1112 = vmatmul.mubr.f32.gmra.mrb[0].mxu0 %v301
        %v1113 = vpop.f32.mrb[0].mxu0
        %v1114 = vadd.f32 %v254, %v1113
        %v1115 = vpop.f32.mrb[0].mxu0
        %v1116 = vadd.f32 %v254, %v1115
        %1117 = vmatprep.mubr.f32.mxu0 0.0
        %1118 = vmatmul.mubr.f32.gmra.mrb[0].mxu0 %v304
        %v1119 = vpop.f32.mrb[0].mxu0
        %v1120 = vadd.f32 %v259, %v1119
        %v1121 = vpop.f32.mrb[0].mxu0
        %v1122 = vadd.f32 %v259, %v1121
        %1123 = vmatprep.mubr.f32.mxu0 0.0
        %1124 = vmatmul.mubr.f32.gmra.mrb[0].mxu0 %v307
        %v1125 = vpop.f32.mrb[0].mxu0
        %v1126 = vadd.f32 %v264, %v1125
        %v1127 = vpop.f32.mrb[0].mxu0
        %v1128 = vadd.f32 %v264, %v1127
        %1129 = vmatprep.mubr.f32.mxu0 0.0
        %1130 = vmatmul.mubr.f32.gmra.mrb[0].mxu0 %v310
        %v1131 = vpop.f32.mrb[0].mxu0
        %v1132 = vadd.f32 %v269, %v1131
        %v1133 = vpop.f32.mrb[0].mxu0
        %v1134 = vadd.f32 %v269, %v1133
        %1135 = vdwg.mxu0
        %1136 = vmatprep.subr.mxu0 %v343
        %1137 = vmatpush1.msra.mxu0 %v341
        %1138 = vmatprep.subr.mxu0 0.0
        %1139 = vmatpush1.msra.mxu0 0.0
        %1140 = vmatprep.subr.mxu0 0.0
        %1141 = vmatpush1.msra.mxu0 0.0
        %1142 = vmatprep.subr.mxu0 0.0
        %1143 = vmatpush1.msra.mxu0 0.0
        %1144 = vmatprep.subr.mxu0 0.0
        %1145 = vmatpush1.msra.mxu0 0.0
        %1146 = vmatprep.subr.mxu0 0.0
        %1147 = vmatpush1.msra.mxu0 0.0
        %1148 = vmatprep.subr.mxu0 0.0
        %1149 = vmatpush1.msra.mxu0 0.0
        %1150 = vmatprep.subr.mxu0 0.0
        %1151 = vmatpush1.msra.mxu0 0.0
        %1152 = vmatprep.subr.mxu0 0.0
        %1153 = vmatpush1.msra.mxu0 0.0
        %1154 = vmatprep.subr.mxu0 0.0
        %1155 = vmatpush1.msra.mxu0 0.0
        %1156 = vmatprep.subr.mxu0 0.0
        %1157 = vmatpush1.msra.mxu0 0.0
        %1158 = vmatprep.subr.mxu0 0.0
        %1159 = vmatpush1.msra.mxu0 0.0
        %1160 = vmatprep.subr.mxu0 0.0
        %1161 = vmatpush1.msra.mxu0 0.0
        %1162 = vmatprep.subr.mxu0 0.0
        %1163 = vmatpush1.msra.mxu0 0.0
        %1164 = vmatprep.subr.mxu0 0.0
        %1165 = vmatpush1.msra.mxu0 0.0
        %1166 = vmatprep.subr.mxu0 0.0
        %1167 = vmatpush1.msra.mxu0 0.0
        %1168 = vmatprep.subr.mxu0 0.0
        %1169 = vmatpush1.msra.mxu0 0.0
        %1170 = vmatprep.subr.mxu0 0.0
        %1171 = vmatpush1.msra.mxu0 0.0
        %1172 = vmatprep.subr.mxu0 0.0
        %1173 = vmatpush1.msra.mxu0 0.0
        %1174 = vmatprep.subr.mxu0 0.0
        %1175 = vmatpush1.msra.mxu0 0.0
        %1176 = vmatprep.subr.mxu0 0.0
        %1177 = vmatpush1.msra.mxu0 0.0
        %1178 = vmatprep.subr.mxu0 0.0
        %1179 = vmatpush1.msra.mxu0 0.0
        %1180 = vmatprep.subr.mxu0 0.0
        %1181 = vmatpush1.msra.mxu0 0.0
        %1182 = vmatprep.subr.mxu0 0.0
        %1183 = vmatpush1.msra.mxu0 0.0
        %1184 = vmatprep.subr.mxu0 0.0
        %1185 = vmatpush1.msra.mxu0 0.0
        %1186 = vmatprep.subr.mxu0 0.0
        %1187 = vmatpush1.msra.mxu0 0.0
        %1188 = vmatprep.subr.mxu0 0.0
        %1189 = vmatpush1.msra.mxu0 0.0
        %1190 = vmatprep.subr.mxu0 0.0
        %1191 = vmatpush1.msra.mxu0 0.0
        %1192 = vmatprep.subr.mxu0 0.0
        %1193 = vmatpush1.msra.mxu0 0.0
        %1194 = vmatprep.subr.mxu0 0.0
        %1195 = vmatpush1.msra.mxu0 0.0
        %1196 = vmatprep.subr.mxu0 0.0
        %1197 = vmatpush1.msra.mxu0 0.0
        %1198 = vmatprep.subr.mxu0 0.0
        %1199 = vmatpush1.msra.mxu0 0.0
        %1200 = vmatprep.mubr.f32.mxu0 0.0
        %1201 = vmatmul.mubr.f32.gmra.mrb[0].mxu0 %v289
        %v1202 = vpop.f32.mrb[0].mxu0
        %v1203 = vadd.f32 %v234, %v1202
        %v1204 = vpop.f32.mrb[0].mxu0
        %v1205 = vadd.f32 %v234, %v1204
        %1206 = vmatprep.mubr.f32.mxu0 0.0
        %1207 = vmatmul.mubr.f32.gmra.mrb[0].mxu0 %v292
        %v1208 = vpop.f32.mrb[0].mxu0
        %v1209 = vadd.f32 %v239, %v1208
        %v1210 = vpop.f32.mrb[0].mxu0
        %v1211 = vadd.f32 %v239, %v1210
        %1212 = vmatprep.mubr.f32.mxu0 0.0
        %1213 = vmatmul.mubr.f32.gmra.mrb[0].mxu0 %v295
        %v1214 = vpop.f32.mrb[0].mxu0
        %v1215 = vadd.f32 %v244, %v1214
        %v1216 = vpop.f32.mrb[0].mxu0
        %v1217 = vadd.f32 %v244, %v1216
        %1218 = vmatprep.mubr.f32.mxu0 0.0
        %1219 = vmatmul.mubr.f32.gmra.mrb[0].mxu0 %v298
        %v1220 = vpop.f32.mrb[0].mxu0
        %v1221 = vadd.f32 %v249, %v1220
        %v1222 = vpop.f32.mrb[0].mxu0
        %v1223 = vadd.f32 %v249, %v1222
        %1224 = vmatprep.mubr.f32.mxu0 0.0
        %1225 = vmatmul.mubr.f32.gmra.mrb[0].mxu0 %v301
        %v1226 = vpop.f32.mrb[0].mxu0
        %v1227 = vadd.f32 %v254, %v1226
        %v1228 = vpop.f32.mrb[0].mxu0
        %v1229 = vadd.f32 %v254, %v1228
        %1230 = vmatprep.mubr.f32.mxu0 0.0
        %1231 = vmatmul.mubr.f32.gmra.mrb[0].mxu0 %v304
        %v1232 = vpop.f32.mrb[0].mxu0
        %v1233 = vadd.f32 %v259, %v1232
        %v1234 = vpop.f32.mrb[0].mxu0
        %v1235 = vadd.f32 %v259, %v1234
        %1236 = vmatprep.mubr.f32.mxu0 0.0
        %1237 = vmatmul.mubr.f32.gmra.mrb[0].mxu0 %v307
        %v1238 = vpop.f32.mrb[0].mxu0
        %v1239 = vadd.f32 %v264, %v1238
        %v1240 = vpop.f32.mrb[0].mxu0
        %v1241 = vadd.f32 %v264, %v1240
        %1242 = vmatprep.mubr.f32.mxu0 0.0
        %1243 = vmatmul.mubr.f32.gmra.mrb[0].mxu0 %v310
        %v1244 = vpop.f32.mrb[0].mxu0
        %v1245 = vadd.f32 %v269, %v1244
        %v1246 = vpop.f32.mrb[0].mxu0
        %v1247 = vadd.f32 %v269, %v1246
        %1248 = vdwg.mxu0
        %v1249 = vmax.f32 %v412, 0.0
        %v1250 = vmax.f32 %v414, 0.0
        %v1251 = vmax.f32 %v525, 0.0
        %v1252 = vmax.f32 %v527, 0.0
        %v1253 = vmax.f32 %v638, 0.0
        %v1254 = vmax.f32 %v640, 0.0
        %v1255 = vmax.f32 %v751, 0.0
        %v1256 = vmax.f32 %v753, 0.0
        %v1257 = vmax.f32 %v864, 0.0
        %v1258 = vmax.f32 %v866, 0.0
        %v1259 = vmax.f32 %v977, 0.0
        %v1260 = vmax.f32 %v979, 0.0
        %v1261 = vmax.f32 %v1090, 0.0
        %v1262 = vmax.f32 %v1092, 0.0
        %v1263 = vmax.f32 %v1203, 0.0
        %v1264 = vmax.f32 %v1205, 0.0
        %v1265 = vmax.f32 %v418, 0.0
        %v1266 = vmax.f32 %v420, 0.0
        %v1267 = vmax.f32 %v531, 0.0
        %v1268 = vmax.f32 %v533, 0.0
        %v1269 = vmax.f32 %v644, 0.0
        %v1270 = vmax.f32 %v646, 0.0
        %v1271 = vmax.f32 %v757, 0.0
        %v1272 = vmax.f32 %v759, 0.0
        %v1273 = vmax.f32 %v870, 0.0
        %v1274 = vmax.f32 %v872, 0.0
        %v1275 = vmax.f32 %v983, 0.0
        %v1276 = vmax.f32 %v985, 0.0
        %v1277 = vmax.f32 %v1096, 0.0
        %v1278 = vmax.f32 %v1098, 0.0
        %v1279 = vmax.f32 %v1209, 0.0
        %v1280 = vmax.f32 %v1211, 0.0
        %v1281 = vmax.f32 %v424, 0.0
        %v1282 = vmax.f32 %v426, 0.0
        %v1283 = vmax.f32 %v537, 0.0
        %v1284 = vmax.f32 %v539, 0.0
        %v1285 = vmax.f32 %v650, 0.0
        %v1286 = vmax.f32 %v652, 0.0
        %v1287 = vmax.f32 %v763, 0.0
        %v1288 = vmax.f32 %v765, 0.0
        %v1289 = vmax.f32 %v876, 0.0
        %v1290 = vmax.f32 %v878, 0.0
        %v1291 = vmax.f32 %v989, 0.0
        %v1292 = vmax.f32 %v991, 0.0
        %v1293 = vmax.f32 %v1102, 0.0
        %v1294 = vmax.f32 %v1104, 0.0
        %v1295 = vmax.f32 %v1215, 0.0
        %v1296 = vmax.f32 %v1217, 0.0
        %v1297 = vmax.f32 %v430, 0.0
        %v1298 = vmax.f32 %v432, 0.0
        %v1299 = vmax.f32 %v543, 0.0
        %v1300 = vmax.f32 %v545, 0.0
        %v1301 = vmax.f32 %v656, 0.0
        %v1302 = vmax.f32 %v658, 0.0
        %v1303 = vmax.f32 %v769, 0.0
        %v1304 = vmax.f32 %v771, 0.0
        %v1305 = vmax.f32 %v882, 0.0
        %v1306 = vmax.f32 %v884, 0.0
        %v1307 = vmax.f32 %v995, 0.0
        %v1308 = vmax.f32 %v997, 0.0
        %v1309 = vmax.f32 %v1108, 0.0
        %v1310 = vmax.f32 %v1110, 0.0
        %v1311 = vmax.f32 %v1221, 0.0
        %v1312 = vmax.f32 %v1223, 0.0
        %v1313 = vmax.f32 %v436, 0.0
        %v1314 = vmax.f32 %v438, 0.0
        %v1315 = vmax.f32 %v549, 0.0
        %v1316 = vmax.f32 %v551, 0.0
        %v1317 = vmax.f32 %v662, 0.0
        %v1318 = vmax.f32 %v664, 0.0
        %v1319 = vmax.f32 %v775, 0.0
        %v1320 = vmax.f32 %v777, 0.0
        %v1321 = vmax.f32 %v888, 0.0
        %v1322 = vmax.f32 %v890, 0.0
        %v1323 = vmax.f32 %v1001, 0.0
        %v1324 = vmax.f32 %v1003, 0.0
        %v1325 = vmax.f32 %v1114, 0.0
        %v1326 = vmax.f32 %v1116, 0.0
        %v1327 = vmax.f32 %v1227, 0.0
        %v1328 = vmax.f32 %v1229, 0.0
        %v1329 = vmax.f32 %v442, 0.0
        %v1330 = vmax.f32 %v444, 0.0
        %v1331 = vmax.f32 %v555, 0.0
        %v1332 = vmax.f32 %v557, 0.0
        %v1333 = vmax.f32 %v668, 0.0
        %v1334 = vmax.f32 %v670, 0.0
        %v1335 = vmax.f32 %v781, 0.0
        %v1336 = vmax.f32 %v783, 0.0
        %v1337 = vmax.f32 %v894, 0.0
        %v1338 = vmax.f32 %v896, 0.0
        %v1339 = vmax.f32 %v1007, 0.0
        %v1340 = vmax.f32 %v1009, 0.0
        %v1341 = vmax.f32 %v1120, 0.0
        %v1342 = vmax.f32 %v1122, 0.0
        %v1343 = vmax.f32 %v1233, 0.0
        %v1344 = vmax.f32 %v1235, 0.0
        %v1345 = vmax.f32 %v448, 0.0
        %v1346 = vmax.f32 %v450, 0.0
        %v1347 = vmax.f32 %v561, 0.0
        %v1348 = vmax.f32 %v563, 0.0
        %v1349 = vmax.f32 %v674, 0.0
        %v1350 = vmax.f32 %v676, 0.0
        %v1351 = vmax.f32 %v787, 0.0
        %v1352 = vmax.f32 %v789, 0.0
        %v1353 = vmax.f32 %v900, 0.0
        %v1354 = vmax.f32 %v902, 0.0
        %v1355 = vmax.f32 %v1013, 0.0
        %v1356 = vmax.f32 %v1015, 0.0
        %v1357 = vmax.f32 %v1126, 0.0
        %v1358 = vmax.f32 %v1128, 0.0
        %v1359 = vmax.f32 %v1239, 0.0
        %v1360 = vmax.f32 %v1241, 0.0
        %v1361 = vmax.f32 %v454, 0.0
        %v1362 = vmax.f32 %v456, 0.0
        %v1363 = vmax.f32 %v567, 0.0
        %v1364 = vmax.f32 %v569, 0.0
        %v1365 = vmax.f32 %v680, 0.0
        %v1366 = vmax.f32 %v682, 0.0
        %v1367 = vmax.f32 %v793, 0.0
        %v1368 = vmax.f32 %v795, 0.0
        %v1369 = vmax.f32 %v906, 0.0
        %v1370 = vmax.f32 %v908, 0.0
        %v1371 = vmax.f32 %v1019, 0.0
        %v1372 = vmax.f32 %v1021, 0.0
        %v1373 = vmax.f32 %v1132, 0.0
        %v1374 = vmax.f32 %v1134, 0.0
        %v1375 = vmax.f32 %v1245, 0.0
        %v1376 = vmax.f32 %v1247, 0.0
        %1377 = vst [vmem:[%s204] sm:$0xff] %v1249
        %1378 = vst [vmem:[%s204 + $0x8] sm:$0xff] %v1250
        %1379 = vst [vmem:[%s204 + $0x10] sm:$0xff] %v1251
        %1380 = vst [vmem:[%s204 + $0x18] sm:$0xff] %v1252
        %1381 = vst [vmem:[%s204 + $0x20] sm:$0xff] %v1253
        %1382 = vst [vmem:[%s204 + $0x28] sm:$0xff] %v1254
        %1383 = vst [vmem:[%s204 + $0x30] sm:$0xff] %v1255
        %1384 = vst [vmem:[%s204 + $0x38] sm:$0xff] %v1256
        %1385 = vst [vmem:[%s204 + $0x40] sm:$0xff] %v1257
        %1386 = vst [vmem:[%s204 + $0x48] sm:$0xff] %v1258
        %1387 = vst [vmem:[%s204 + $0x50] sm:$0xff] %v1259
        %1388 = vst [vmem:[%s204 + $0x58] sm:$0xff] %v1260
        %1389 = vst [vmem:[%s204 + $0x60] sm:$0xff] %v1261
        %1390 = vst [vmem:[%s204 + $0x68] sm:$0xff] %v1262
        %1391 = vst [vmem:[%s204 + $0x70] sm:$0xff] %v1263
        %1392 = vst [vmem:[%s204 + $0x78] sm:$0xff] %v1264
        %1393 = vst [vmem:[%s204 + $0x80] sm:$0xff] %v1265
        %1394 = vst [vmem:[%s204 + $0x88] sm:$0xff] %v1266
        %1395 = vst [vmem:[%s204 + $0x90] sm:$0xff] %v1267
        %1396 = vst [vmem:[%s204 + $0x98] sm:$0xff] %v1268
        %1397 = vst [vmem:[%s204 + $0xa0] sm:$0xff] %v1269
        %1398 = vst [vmem:[%s204 + $0xa8] sm:$0xff] %v1270
        %1399 = vst [vmem:[%s204 + $0xb0] sm:$0xff] %v1271
        %1400 = vst [vmem:[%s204 + $0xb8] sm:$0xff] %v1272
        %1401 = vst [vmem:[%s204 + $0xc0] sm:$0xff] %v1273
        %1402 = vst [vmem:[%s204 + $0xc8] sm:$0xff] %v1274
        %1403 = vst [vmem:[%s204 + $0xd0] sm:$0xff] %v1275
        %1404 = vst [vmem:[%s204 + $0xd8] sm:$0xff] %v1276
        %1405 = vst [vmem:[%s204 + $0xe0] sm:$0xff] %v1277
        %1406 = vst [vmem:[%s204 + $0xe8] sm:$0xff] %v1278
        %1407 = vst [vmem:[%s204 + $0xf0] sm:$0xff] %v1279
        %1408 = vst [vmem:[%s204 + $0xf8] sm:$0xff] %v1280
        %1409 = vst [vmem:[%s204 + $0x100] sm:$0xff] %v1281
        %1410 = vst [vmem:[%s204 + $0x108] sm:$0xff] %v1282
        %1411 = vst [vmem:[%s204 + $0x110] sm:$0xff] %v1283
        %1412 = vst [vmem:[%s204 + $0x118] sm:$0xff] %v1284
        %1413 = vst [vmem:[%s204 + $0x120] sm:$0xff] %v1285
        %1414 = vst [vmem:[%s204 + $0x128] sm:$0xff] %v1286
        %1415 = vst [vmem:[%s204 + $0x130] sm:$0xff] %v1287
        %1416 = vst [vmem:[%s204 + $0x138] sm:$0xff] %v1288
        %1417 = vst [vmem:[%s204 + $0x140] sm:$0xff] %v1289
        %1418 = vst [vmem:[%s204 + $0x148] sm:$0xff] %v1290
        %1419 = vst [vmem:[%s204 + $0x150] sm:$0xff] %v1291
        %1420 = vst [vmem:[%s204 + $0x158] sm:$0xff] %v1292
        %1421 = vst [vmem:[%s204 + $0x160] sm:$0xff] %v1293
        %1422 = vst [vmem:[%s204 + $0x168] sm:$0xff] %v1294
        %1423 = vst [vmem:[%s204 + $0x170] sm:$0xff] %v1295
        %1424 = vst [vmem:[%s204 + $0x178] sm:$0xff] %v1296
        %1425 = vst [vmem:[%s204 + $0x180] sm:$0xff] %v1297
        %1426 = vst [vmem:[%s204 + $0x188] sm:$0xff] %v1298
        %1427 = vst [vmem:[%s204 + $0x190] sm:$0xff] %v1299
        %1428 = vst [vmem:[%s204 + $0x198] sm:$0xff] %v1300
        %1429 = vst [vmem:[%s204 + $0x1a0] sm:$0xff] %v1301
        %1430 = vst [vmem:[%s204 + $0x1a8] sm:$0xff] %v1302
        %1431 = vst [vmem:[%s204 + $0x1b0] sm:$0xff] %v1303
        %1432 = vst [vmem:[%s204 + $0x1b8] sm:$0xff] %v1304
        %1433 = vst [vmem:[%s204 + $0x1c0] sm:$0xff] %v1305
        %1434 = vst [vmem:[%s204 + $0x1c8] sm:$0xff] %v1306
        %1435 = vst [vmem:[%s204 + $0x1d0] sm:$0xff] %v1307
        %1436 = vst [vmem:[%s204 + $0x1d8] sm:$0xff] %v1308
        %1437 = vst [vmem:[%s204 + $0x1e0] sm:$0xff] %v1309
        %1438 = vst [vmem:[%s204 + $0x1e8] sm:$0xff] %v1310
        %1439 = vst [vmem:[%s204 + $0x1f0] sm:$0xff] %v1311
        %1440 = vst [vmem:[%s204 + $0x1f8] sm:$0xff] %v1312
        %1441 = vst [vmem:[%s204 + $0x200] sm:$0xff] %v1313
        %1442 = vst [vmem:[%s204 + $0x208] sm:$0xff] %v1314
        %1443 = vst [vmem:[%s204 + $0x210] sm:$0xff] %v1315
        %1444 = vst [vmem:[%s204 + $0x218] sm:$0xff] %v1316
        %1445 = vst [vmem:[%s204 + $0x220] sm:$0xff] %v1317
        %1446 = vst [vmem:[%s204 + $0x228] sm:$0xff] %v1318
        %1447 = vst [vmem:[%s204 + $0x230] sm:$0xff] %v1319
        %1448 = vst [vmem:[%s204 + $0x238] sm:$0xff] %v1320
        %1449 = vst [vmem:[%s204 + $0x240] sm:$0xff] %v1321
        %1450 = vst [vmem:[%s204 + $0x248] sm:$0xff] %v1322
        %1451 = vst [vmem:[%s204 + $0x250] sm:$0xff] %v1323
        %1452 = vst [vmem:[%s204 + $0x258] sm:$0xff] %v1324
        %1453 = vst [vmem:[%s204 + $0x260] sm:$0xff] %v1325
        %1454 = vst [vmem:[%s204 + $0x268] sm:$0xff] %v1326
        %1455 = vst [vmem:[%s204 + $0x270] sm:$0xff] %v1327
        %1456 = vst [vmem:[%s204 + $0x278] sm:$0xff] %v1328
        %1457 = vst [vmem:[%s204 + $0x280] sm:$0xff] %v1329
        %1458 = vst [vmem:[%s204 + $0x288] sm:$0xff] %v1330
        %1459 = vst [vmem:[%s204 + $0x290] sm:$0xff] %v1331
        %1460 = vst [vmem:[%s204 + $0x298] sm:$0xff] %v1332
        %1461 = vst [vmem:[%s204 + $0x2a0] sm:$0xff] %v1333
        %1462 = vst [vmem:[%s204 + $0x2a8] sm:$0xff] %v1334
        %1463 = vst [vmem:[%s204 + $0x2b0] sm:$0xff] %v1335
        %1464 = vst [vmem:[%s204 + $0x2b8] sm:$0xff] %v1336
        %1465 = vst [vmem:[%s204 + $0x2c0] sm:$0xff] %v1337
        %1466 = vst [vmem:[%s204 + $0x2c8] sm:$0xff] %v1338
        %1467 = vst [vmem:[%s204 + $0x2d0] sm:$0xff] %v1339
        %1468 = vst [vmem:[%s204 + $0x2d8] sm:$0xff] %v1340
        %1469 = vst [vmem:[%s204 + $0x2e0] sm:$0xff] %v1341
        %1470 = vst [vmem:[%s204 + $0x2e8] sm:$0xff] %v1342
        %1471 = vst [vmem:[%s204 + $0x2f0] sm:$0xff] %v1343
        %1472 = vst [vmem:[%s204 + $0x2f8] sm:$0xff] %v1344
        %1473 = vst [vmem:[%s204 + $0x300] sm:$0xff] %v1345
        %1474 = vst [vmem:[%s204 + $0x308] sm:$0xff] %v1346
        %1475 = vst [vmem:[%s204 + $0x310] sm:$0xff] %v1347
        %1476 = vst [vmem:[%s204 + $0x318] sm:$0xff] %v1348
        %1477 = vst [vmem:[%s204 + $0x320] sm:$0xff] %v1349
        %1478 = vst [vmem:[%s204 + $0x328] sm:$0xff] %v1350
        %1479 = vst [vmem:[%s204 + $0x330] sm:$0xff] %v1351
        %1480 = vst [vmem:[%s204 + $0x338] sm:$0xff] %v1352
        %1481 = vst [vmem:[%s204 + $0x340] sm:$0xff] %v1353
        %1482 = vst [vmem:[%s204 + $0x348] sm:$0xff] %v1354
        %1483 = vst [vmem:[%s204 + $0x350] sm:$0xff] %v1355
        %1484 = vst [vmem:[%s204 + $0x358] sm:$0xff] %v1356
        %1485 = vst [vmem:[%s204 + $0x360] sm:$0xff] %v1357
        %1486 = vst [vmem:[%s204 + $0x368] sm:$0xff] %v1358
        %1487 = vst [vmem:[%s204 + $0x370] sm:$0xff] %v1359
        %1488 = vst [vmem:[%s204 + $0x378] sm:$0xff] %v1360
        %1489 = vst [vmem:[%s204 + $0x380] sm:$0xff] %v1361
        %1490 = vst [vmem:[%s204 + $0x388] sm:$0xff] %v1362
        %1491 = vst [vmem:[%s204 + $0x390] sm:$0xff] %v1363
        %1492 = vst [vmem:[%s204 + $0x398] sm:$0xff] %v1364
        %1493 = vst [vmem:[%s204 + $0x3a0] sm:$0xff] %v1365
        %1494 = vst [vmem:[%s204 + $0x3a8] sm:$0xff] %v1366
        %1495 = vst [vmem:[%s204 + $0x3b0] sm:$0xff] %v1367
        %1496 = vst [vmem:[%s204 + $0x3b8] sm:$0xff] %v1368
        %1497 = vst [vmem:[%s204 + $0x3c0] sm:$0xff] %v1369
        %1498 = vst [vmem:[%s204 + $0x3c8] sm:$0xff] %v1370
        %1499 = vst [vmem:[%s204 + $0x3d0] sm:$0xff] %v1371
        %1500 = vst [vmem:[%s204 + $0x3d8] sm:$0xff] %v1372
        %1501 = vst [vmem:[%s204 + $0x3e0] sm:$0xff] %v1373
        %1502 = vst [vmem:[%s204 + $0x3e8] sm:$0xff] %v1374
        %1503 = vst [vmem:[%s204 + $0x3f0] sm:$0xff] %v1375
        %1504 = vst [vmem:[%s204 + $0x3f8] sm:$0xff] %v1376
        %s1505 = sand.u32 %s112, 1
        %s1506 = scalar_lea.sflag [#allocation4], %s1505
        %s1507 = sand.u32 %s112, 1
        %s1508 = smul.addr %s1507, 1024
        %s1509 = scalar_lea.vmem [#allocation5], %s1508
        // Predicated region
        $region37: #{tpu_custom_call.1} parent=31 // pred_check
          %p1510 = pneg %p122
        $region38: #{tpu_custom_call.1} parent=31 // pred_check_branch
          %1512 = sbr.rel (%p1510) target = $region40
        $region39: #{tpu_custom_call.1} parent=31 // pred_region
          %s1513 = smul.u32 16, %s25
          %s1515 = ssub.s32 16384, 16384
          %1516 = vsyncadd %s1506, %s1515
          %s1517 = smul.addr %s24, 256
          %s1518 = sadd.s32 %s1513, %s1517
          %s1519 = smul.addr %s1518, 128
          %s1520 = scalar_lea.hbm %s3, %s1519
          %s1521 = sshll.u32 %s1509, 4
          %s1522 = int_to_ptr.vmem [resolvable:$true] %s1521
          %1527 = dma.vmem_to_hbm [thread:$0]  %s1522, 16384, %s1520, %s1506, 2048, 4096, 128
        $region40: #{tpu_custom_call.1} parent=31 // pred_fallthru
          _
      $region32: #{tpu_custom_call.1} parent=5 // pred_fallthru
        _
      %p1528 = scmp.le.s32.totalorder 2, %s15
      // Predicated region
      $region41: #{tpu_custom_call.1} parent=5 // pred_check
        %p1529 = pneg %p1528
      $region42: #{tpu_custom_call.1} parent=5 // pred_check_branch
        %1531 = sbr.rel (%p1529) target = $region44
      $region43: #{tpu_custom_call.1} parent=5 // pred_region
        %s1532 = ssub.s32 %s15, 2
        // Predicated region
        $region45: #{tpu_custom_call.1} parent=43 // pred_check
          %p1533 = pneg %p128
        $region46: #{tpu_custom_call.1} parent=43 // pred_check_branch
          %1535 = sbr.rel (%p1533) target = $region48
        $region47: #{tpu_custom_call.1} parent=43 // pred_region
          %s1536 = sand.u32 %s113, 1
          %s1537 = scalar_lea.sflag [#allocation4], %s1536
          %s1538 = sand.u32 %s113, 1
          %s1539 = smul.addr %s1538, 1024
          %s1540 = scalar_lea.vmem [#allocation5], %s1539
          %1541 = dma.done %s1537, 16384
        $region48: #{tpu_custom_call.1} parent=43 // pred_fallthru
          _
      $region44: #{tpu_custom_call.1} parent=5 // pred_fallthru
        _
    $region6: #{tpu_custom_call.1} parent=1 // loop_footer
      %s19 = sadd.s32 1, %s15
    $region7: #{tpu_custom_call.1} parent=1 // loop_footer_branch
      %14 = sbr.rel target = $region3
    $region8: #{tpu_custom_call.1} parent=1 // loop_exit
      _
    %1542 = vsyncpa [#allocation3], 1
    %s1543 = scalar_lea.sflag [#allocation3], 1
    %1544 = vsyncpa %s1543, 1
    %1545 = vsyncpa [#allocation4], 1
    %s1546 = scalar_lea.sflag [#allocation4], 1
    %1547 = vsyncpa %s1546, 1

</llo_original>
